<compile_context>
chip_gen: v5e
topology: v5e:2x2
jax: 0.10.0
libtpu: 0.0.40
codegen_flags: <defaults>
</compile_context>

<pallas_src>
import jax
import jax.numpy as jnp
from jax.experimental import pallas as pl
from jax.experimental.pallas import tpu as pltpu


# --------------------------------------------------------------------------- #
# Kernel
# --------------------------------------------------------------------------- #
def _generator_mlp_kernel(x_ref, l_ref, w1x_ref, w1l_ref, b1_ref,
                          w2_ref, b2_ref, w3_ref, b3_ref, o_ref):
    # x_ref:   (TB, noise_dim)  f32   l_ref: (TB, label_dim) f32
    # w1x_ref: (noise_dim, Hp)  bf16  w1l_ref: (label_dim, Hp) bf16
    # w2_ref:  (Hp, Hp) bf16          w3_ref: (Hp, Op) bf16
    # b*_ref:  (1, Hp|Op) f32         o_ref: (TB, Op) f32
    cdt = w1x_ref.dtype  # MXU compute dtype (bf16); f32 accumulation below.

    # Layer 1: fused "concat" as a split matmul over the two input halves.
    h = jnp.dot(x_ref[...].astype(cdt), w1x_ref[...],
                preferred_element_type=jnp.float32)
    h += jnp.dot(l_ref[...].astype(cdt), w1l_ref[...],
                 preferred_element_type=jnp.float32)
    h = jnp.maximum(h + b1_ref[...], 0.0)                 # ReLU in f32 (VPU)

    # Layer 2
    h = jnp.dot(h.astype(cdt), w2_ref[...], preferred_element_type=jnp.float32)
    h = jnp.maximum(h + b2_ref[...], 0.0)

    # Layer 3 + Tanh
    h = jnp.dot(h.astype(cdt), w3_ref[...], preferred_element_type=jnp.float32)
    o_ref[...] = jnp.tanh(h + b3_ref[...])                # tanh in f32 (EUP)


# --------------------------------------------------------------------------- #
# Wrapper / parameter preparation
# --------------------------------------------------------------------------- #
def _round_up(x, m):
    return ((x + m - 1) // m) * m


def _choose_tile_b(B):
    """Largest batch tile that is a multiple of 8, divides B, is <= 256 and —
    when possible — yields >= 2 (preferably an even number of) grid steps so
    the pipeline double-buffers and v7x's two TensorCores both get work."""
    if B <= 8:
        return B
    divisors = [t for t in range(8, min(B, 256) + 1, 8) if B % t == 0]
    if not divisors:
        return B  # odd batch: single full-batch block
    multi_step = [t for t in divisors if B // t >= 2]
    even_step = [t for t in multi_step if (B // t) % 2 == 0]
    pool = even_step or multi_step or divisors
    return max(pool)


def prepare_generator_params(params, noise_dim, label_dim, *,
                             compute_dtype=jnp.bfloat16, lane=128):
    """One-time parameter prep (NOT per forward call).

    params: PyTorch nn.Linear layout — w: (out, in), b: (out,).
    Transposes to (in, out), splits w1 rows for the fused concat, zero-pads the
    feature dims to multiples of `lane`, and casts weights to `compute_dtype`.
    """
    w1, b1 = params["w1"], params["b1"]
    w2, b2 = params["w2"], params["b2"]
    w3, b3 = params["w3"], params["b3"]

    hidden = int(w1.shape[0])
    out_sz = int(w3.shape[0])
    assert int(w1.shape[1]) == noise_dim + label_dim
    Hp = _round_up(hidden, lane)
    Op = _round_up(out_sz, lane)

    def pad2(a, rows, cols):
        out = jnp.zeros((rows, cols), a.dtype)
        return out.at[: a.shape[0], : a.shape[1]].set(a)

    w1t = jnp.asarray(w1).T                                        # (in, hidden)
    w1x = pad2(w1t[:noise_dim], noise_dim, Hp).astype(compute_dtype)
    w1l = pad2(w1t[noise_dim:], label_dim, Hp).astype(compute_dtype)
    w2p = pad2(jnp.asarray(w2).T, Hp, Hp).astype(compute_dtype)
    w3p = pad2(jnp.asarray(w3).T, Hp, Op).astype(compute_dtype)

    b1p = jnp.zeros((1, Hp), jnp.float32).at[0, :hidden].set(b1.astype(jnp.float32))
    b2p = jnp.zeros((1, Hp), jnp.float32).at[0, :hidden].set(b2.astype(jnp.float32))
    b3p = jnp.zeros((1, Op), jnp.float32).at[0, :out_sz].set(b3.astype(jnp.float32))

    return {
        "w1x": w1x, "w1l": w1l, "b1": b1p,
        "w2": w2p, "b2": b2p, "w3": w3p, "b3": b3p,
        "noise_dim": noise_dim, "label_dim": label_dim,
        "hidden_pad": Hp, "out_pad": Op, "output_size": out_sz,
    }


def _build_generator_call(B, tile_b, noise_dim, label_dim, Hp, Op,
                          vmem_limit, single_buffer_weights):
    grid = (B // tile_b,)

    def replicated(shape):
        # Same full block every grid step (constant index_map); single-buffer
        # when supported to halve the resident weight footprint (v7x: 64 MiB).
        kwargs = {}
        if single_buffer_weights:
            kwargs["pipeline_mode"] = pl.Buffered(1)
        return pl.BlockSpec(shape, lambda i: (0,) * len(shape), **kwargs)

    return pl.pallas_call(
        _generator_mlp_kernel,
        out_shape=jax.ShapeDtypeStruct((B, Op), jnp.float32),
        grid=grid,
        in_specs=[
            pl.BlockSpec((tile_b, noise_dim), lambda i: (i, 0)),   # x      (streamed)
            pl.BlockSpec((tile_b, label_dim), lambda i: (i, 0)),   # labels (streamed)
            replicated((noise_dim, Hp)),                           # w1 (noise rows)
            replicated((label_dim, Hp)),                           # w1 (label rows)
            replicated((1, Hp)),                                   # b1
            replicated((Hp, Hp)),                                  # w2
            replicated((1, Hp)),                                   # b2
            replicated((Hp, Op)),                                  # w3
            replicated((1, Op)),                                   # b3
        ],
        out_specs=pl.BlockSpec((tile_b, Op), lambda i: (i, 0)),
        compiler_params=pltpu.CompilerParams(
            dimension_semantics=("parallel",),                     # megacore on v7x
            vmem_limit_bytes=vmem_limit,
        ),
    )


def generator_forward(x, labels, prep, *, tile_b=None):
    """Pallas implementation of Generator.forward(x, labels).

    x:      (B, noise_dim) float32
    labels: (B, label_dim) float32
    prep:   output of prepare_generator_params
    """
    B = x.shape[0]
    noise_dim, label_dim = prep["noise_dim"], prep["label_dim"]
    Hp, Op = prep["hidden_pad"], prep["out_pad"]
    assert labels.shape[0] == B
    assert x.shape[1] == noise_dim and labels.shape[1] == label_dim

    if tile_b is None:
        tile_b = _choose_tile_b(B)
    assert B % tile_b == 0, "tile_b must divide the batch"
    assert tile_b == B or tile_b % 8 == 0, "batch tile must be sublane(8)-aligned"

    # VMEM budget: double-buffered streaming tiles + (up to double-buffered)
    # resident weights + live f32 activations; clamp well under every
    # generation's scoped default (v5e 16 MiB default, v7x 64 MiB physical).
    w_bytes = sum(int(prep[k].size) * prep[k].dtype.itemsize
                  for k in ("w1x", "w1l", "b1", "w2", "b2", "w3", "b3"))
    io_bytes = tile_b * (noise_dim + label_dim) * x.dtype.itemsize + tile_b * Op * 4
    est = 2 * w_bytes + 2 * io_bytes + 3 * tile_b * Hp * 4
    vmem_limit = int(min(max(2 * est + (8 << 20), 16 << 20), 48 << 20))

    args = (x, labels, prep["w1x"], prep["w1l"], prep["b1"],
            prep["w2"], prep["b2"], prep["w3"], prep["b3"])
    try:
        out_pad = _build_generator_call(
            B, tile_b, noise_dim, label_dim, Hp, Op,
            vmem_limit, single_buffer_weights=True)(*args)
    except Exception:
        # pl.Buffered(1) not supported by this jax build: fall back to the
        # default double-buffered weight specs (correctness identical).
        out_pad = _build_generator_call(
            B, tile_b, noise_dim, label_dim, Hp, Op,
            vmem_limit, single_buffer_weights=False)(*args)

    return out_pad[:, : prep["output_size"]]   # strip lane padding


# --------------------------------------------------------------------------- #
# Params / reference / demo
# --------------------------------------------------------------------------- #
def init_generator_params(key, input_size, hidden_dim, output_size):
    """Deterministic synthetic params in PyTorch nn.Linear layout (out, in)."""
    ks = jax.random.split(key, 6)

    def linear(kw, kb, fan_in, fan_out):
        bound = 1.0 / jnp.sqrt(jnp.float32(fan_in))
        w = jax.random.uniform(kw, (fan_out, fan_in), jnp.float32, -bound, bound)
        b = jax.random.uniform(kb, (fan_out,), jnp.float32, -bound, bound)
        return w, b

    w1, b1 = linear(ks[0], ks[1], input_size, hidden_dim)
    w2, b2 = linear(ks[2], ks[3], hidden_dim, hidden_dim)
    w3, b3 = linear(ks[4], ks[5], hidden_dim, output_size)
    return {"w1": w1, "b1": b1, "w2": w2, "b2": b2, "w3": w3, "b3": b3}


def _reference_forward(x, labels, params):
    # Plain-JAX f32 reference mirroring the PyTorch module.
    h = jnp.concatenate([x, labels], axis=1)
    h = jnp.maximum(h @ params["w1"].T + params["b1"], 0.0)
    h = jnp.maximum(h @ params["w2"].T + params["b2"], 0.0)
    return jnp.tanh(h @ params["w3"].T + params["b3"])


if __name__ == "__main__":
    # Small shapes consistent with the module: input_size = noise_dim + label_dim.
    batch = 64                       # -> tile_b = 32, grid = (2,) (pipelined, even)
    noise_dim = 16
    label_dim = 16
    input_size = noise_dim + label_dim   # 32
    hidden_dim = 32
    output_size = 16

    key = jax.random.PRNGKey(0)
    kx, kl, kp = jax.random.split(key, 3)
    x = jax.random.normal(kx, (batch, noise_dim), jnp.float32)
    labels = jax.random.normal(kl, (batch, label_dim), jnp.float32)
    raw_params = init_generator_params(kp, input_size, hidden_dim, output_size)

    prep = prepare_generator_params(raw_params, noise_dim, label_dim)

    out = generator_forward(x, labels, prep)
    out = jax.block_until_ready(out)

    ref = _reference_forward(x, labels, raw_params)
    assert out.shape == (batch, output_size)
    max_err = float(jnp.max(jnp.abs(out - ref)))
    # bf16 MXU inputs with f32 accumulation: loose-but-tight-enough tolerance.
    assert jnp.allclose(out, ref, atol=2e-2, rtol=2e-2), max_err

    print("KERNEL_OK")
</pallas_src>

<mosaic_0001>
module attributes {stable_mosaic.version = 11 : i64} {
  func.func @_generator_mlp_kernel(%arg0: i32, %arg1: memref<32x16xf32, #tpu.memory_space<vmem>>, %arg2: memref<32x16xf32, #tpu.memory_space<vmem>>, %arg3: memref<16x128xbf16, #tpu.memory_space<vmem>>, %arg4: memref<16x128xbf16, #tpu.memory_space<vmem>>, %arg5: memref<1x128xf32, #tpu.memory_space<vmem>>, %arg6: memref<128x128xbf16, #tpu.memory_space<vmem>>, %arg7: memref<1x128xf32, #tpu.memory_space<vmem>>, %arg8: memref<128x128xbf16, #tpu.memory_space<vmem>>, %arg9: memref<1x128xf32, #tpu.memory_space<vmem>>, %arg10: memref<32x128xf32, #tpu.memory_space<vmem>>) attributes {dimension_semantics = [#tpu.dimension_semantics<parallel>], iteration_bounds = array<i64: 2>, scalar_prefetch = 0 : i64, scratch_operands = 0 : i64, tpu.core_type = #tpu.core_type<tc>, window_params = [{transform_indices = @transform_0, window_bounds = array<i64: 32, 16>}, {transform_indices = @transform_1, window_bounds = array<i64: 32, 16>}, {pipeline_mode = #tpu.pipeline_mode<synchronous>, transform_indices = @transform_2, window_bounds = array<i64: 16, 128>}, {pipeline_mode = #tpu.pipeline_mode<synchronous>, transform_indices = @transform_3, window_bounds = array<i64: 16, 128>}, {pipeline_mode = #tpu.pipeline_mode<synchronous>, transform_indices = @transform_4, window_bounds = array<i64: 1, 128>}, {pipeline_mode = #tpu.pipeline_mode<synchronous>, transform_indices = @transform_5, window_bounds = array<i64: 128, 128>}, {pipeline_mode = #tpu.pipeline_mode<synchronous>, transform_indices = @transform_6, window_bounds = array<i64: 1, 128>}, {pipeline_mode = #tpu.pipeline_mode<synchronous>, transform_indices = @transform_7, window_bounds = array<i64: 128, 128>}, {pipeline_mode = #tpu.pipeline_mode<synchronous>, transform_indices = @transform_8, window_bounds = array<i64: 1, 128>}, {transform_indices = @transform_9, window_bounds = array<i64: 32, 128>}]} {
    %c0 = arith.constant 0 : index
    %c0_0 = arith.constant 0 : index
    %0 = vector.load %arg1[%c0, %c0_0] : memref<32x16xf32, #tpu.memory_space<vmem>>, vector<32x16xf32>
    %1 = arith.truncf %0 : vector<32x16xf32> to vector<32x16xbf16>
    %c0_1 = arith.constant 0 : index
    %c0_2 = arith.constant 0 : index
    %2 = vector.load %arg3[%c0_1, %c0_2] : memref<16x128xbf16, #tpu.memory_space<vmem>>, vector<16x128xbf16>
    %cst = arith.constant dense<0.000000e+00> : vector<32x128xf32>
    %3 = tpu.matmul %1, %2, %cst {dimension_numbers = #tpu.dot_dimension_numbers<[1], [0], [0], [1], [0, 0, 1, 1], [], []>} : vector<32x16xbf16>, vector<16x128xbf16>, vector<32x128xf32> -> vector<32x128xf32>
    %c0_3 = arith.constant 0 : index
    %c0_4 = arith.constant 0 : index
    %4 = vector.load %arg2[%c0_3, %c0_4] : memref<32x16xf32, #tpu.memory_space<vmem>>, vector<32x16xf32>
    %5 = arith.truncf %4 : vector<32x16xf32> to vector<32x16xbf16>
    %c0_5 = arith.constant 0 : index
    %c0_6 = arith.constant 0 : index
    %6 = vector.load %arg4[%c0_5, %c0_6] : memref<16x128xbf16, #tpu.memory_space<vmem>>, vector<16x128xbf16>
    %cst_7 = arith.constant dense<0.000000e+00> : vector<32x128xf32>
    %7 = tpu.matmul %5, %6, %cst_7 {dimension_numbers = #tpu.dot_dimension_numbers<[1], [0], [0], [1], [0, 0, 1, 1], [], []>} : vector<32x16xbf16>, vector<16x128xbf16>, vector<32x128xf32> -> vector<32x128xf32>
    %8 = arith.addf %3, %7 : vector<32x128xf32>
    %c0_8 = arith.constant 0 : index
    %c0_9 = arith.constant 0 : index
    %9 = vector.load %arg5[%c0_8, %c0_9] : memref<1x128xf32, #tpu.memory_space<vmem>>, vector<1x128xf32>
    %10 = vector.broadcast %9 : vector<1x128xf32> to vector<32x128xf32>
    %11 = arith.addf %8, %10 : vector<32x128xf32>
    %cst_10 = arith.constant 0.000000e+00 : f32
    %12 = vector.broadcast %cst_10 : f32 to vector<32x128xf32>
    %13 = arith.maximumf %11, %12 : vector<32x128xf32>
    %14 = arith.truncf %13 : vector<32x128xf32> to vector<32x128xbf16>
    %c0_11 = arith.constant 0 : index
    %c0_12 = arith.constant 0 : index
    %15 = vector.load %arg6[%c0_11, %c0_12] : memref<128x128xbf16, #tpu.memory_space<vmem>>, vector<128x128xbf16>
    %cst_13 = arith.constant dense<0.000000e+00> : vector<32x128xf32>
    %16 = tpu.matmul %14, %15, %cst_13 {dimension_numbers = #tpu.dot_dimension_numbers<[1], [0], [0], [1], [0, 0, 1, 1], [], []>} : vector<32x128xbf16>, vector<128x128xbf16>, vector<32x128xf32> -> vector<32x128xf32>
    %c0_14 = arith.constant 0 : index
    %c0_15 = arith.constant 0 : index
    %17 = vector.load %arg7[%c0_14, %c0_15] : memref<1x128xf32, #tpu.memory_space<vmem>>, vector<1x128xf32>
    %18 = vector.broadcast %17 : vector<1x128xf32> to vector<32x128xf32>
    %19 = arith.addf %16, %18 : vector<32x128xf32>
    %cst_16 = arith.constant 0.000000e+00 : f32
    %20 = vector.broadcast %cst_16 : f32 to vector<32x128xf32>
    %21 = arith.maximumf %19, %20 : vector<32x128xf32>
    %22 = arith.truncf %21 : vector<32x128xf32> to vector<32x128xbf16>
    %c0_17 = arith.constant 0 : index
    %c0_18 = arith.constant 0 : index
    %23 = vector.load %arg8[%c0_17, %c0_18] : memref<128x128xbf16, #tpu.memory_space<vmem>>, vector<128x128xbf16>
    %cst_19 = arith.constant dense<0.000000e+00> : vector<32x128xf32>
    %24 = tpu.matmul %22, %23, %cst_19 {dimension_numbers = #tpu.dot_dimension_numbers<[1], [0], [0], [1], [0, 0, 1, 1], [], []>} : vector<32x128xbf16>, vector<128x128xbf16>, vector<32x128xf32> -> vector<32x128xf32>
    %c0_20 = arith.constant 0 : index
    %c0_21 = arith.constant 0 : index
    %25 = vector.load %arg9[%c0_20, %c0_21] : memref<1x128xf32, #tpu.memory_space<vmem>>, vector<1x128xf32>
    %26 = vector.broadcast %25 : vector<1x128xf32> to vector<32x128xf32>
    %27 = arith.addf %24, %26 : vector<32x128xf32>
    %28 = math.tanh %27 : vector<32x128xf32>
    %c0_22 = arith.constant 0 : index
    %c0_23 = arith.constant 0 : index
    %29 = vector.load %arg10[%c0_22, %c0_23] : memref<32x128xf32, #tpu.memory_space<vmem>>, vector<32x128xf32>
    tpu.vector_store %arg10[%c0_22, %c0_23], %28 {strides = array<i32>} : memref<32x128xf32, #tpu.memory_space<vmem>>, vector<32x128xf32>,
    return
  }
  func.func @transform_0(%arg0: i32) -> (i32, i32) {
    %c0_i32 = arith.constant 0 : i32
    %c0_i32_0 = arith.constant 0 : i32
    return %arg0, %c0_i32 : i32, i32
  }
  func.func @transform_1(%arg0: i32) -> (i32, i32) {
    %c0_i32 = arith.constant 0 : i32
    %c0_i32_0 = arith.constant 0 : i32
    return %arg0, %c0_i32 : i32, i32
  }
  func.func @transform_2(%arg0: i32) -> (i32, i32) {
    %c0_i32 = arith.constant 0 : i32
    %c0_i32_0 = arith.constant 0 : i32
    %c0_i32_1 = arith.constant 0 : i32
    return %c0_i32, %c0_i32_0 : i32, i32
  }
  func.func @transform_3(%arg0: i32) -> (i32, i32) {
    %c0_i32 = arith.constant 0 : i32
    %c0_i32_0 = arith.constant 0 : i32
    %c0_i32_1 = arith.constant 0 : i32
    return %c0_i32, %c0_i32_0 : i32, i32
  }
  func.func @transform_4(%arg0: i32) -> (i32, i32) {
    %c0_i32 = arith.constant 0 : i32
    %c0_i32_0 = arith.constant 0 : i32
    %c0_i32_1 = arith.constant 0 : i32
    return %c0_i32, %c0_i32_0 : i32, i32
  }
  func.func @transform_5(%arg0: i32) -> (i32, i32) {
    %c0_i32 = arith.constant 0 : i32
    %c0_i32_0 = arith.constant 0 : i32
    %c0_i32_1 = arith.constant 0 : i32
    return %c0_i32, %c0_i32_0 : i32, i32
  }
  func.func @transform_6(%arg0: i32) -> (i32, i32) {
    %c0_i32 = arith.constant 0 : i32
    %c0_i32_0 = arith.constant 0 : i32
    %c0_i32_1 = arith.constant 0 : i32
    return %c0_i32, %c0_i32_0 : i32, i32
  }
  func.func @transform_7(%arg0: i32) -> (i32, i32) {
    %c0_i32 = arith.constant 0 : i32
    %c0_i32_0 = arith.constant 0 : i32
    %c0_i32_1 = arith.constant 0 : i32
    return %c0_i32, %c0_i32_0 : i32, i32
  }
  func.func @transform_8(%arg0: i32) -> (i32, i32) {
    %c0_i32 = arith.constant 0 : i32
    %c0_i32_0 = arith.constant 0 : i32
    %c0_i32_1 = arith.constant 0 : i32
    return %c0_i32, %c0_i32_0 : i32, i32
  }
  func.func @transform_9(%arg0: i32) -> (i32, i32) {
    %c0_i32 = arith.constant 0 : i32
    %c0_i32_0 = arith.constant 0 : i32
    return %arg0, %c0_i32 : i32, i32
  }
}

module attributes {stable_mosaic.version = 11 : i64} {
  func.func @_generator_mlp_kernel(%arg0: i32, %arg1: memref<32x16xf32, #tpu.memory_space<vmem>>, %arg2: memref<32x16xf32, #tpu.memory_space<vmem>>, %arg3: memref<16x128xbf16, #tpu.memory_space<vmem>>, %arg4: memref<16x128xbf16, #tpu.memory_space<vmem>>, %arg5: memref<1x128xf32, #tpu.memory_space<vmem>>, %arg6: memref<128x128xbf16, #tpu.memory_space<vmem>>, %arg7: memref<1x128xf32, #tpu.memory_space<vmem>>, %arg8: memref<128x128xbf16, #tpu.memory_space<vmem>>, %arg9: memref<1x128xf32, #tpu.memory_space<vmem>>, %arg10: memref<32x128xf32, #tpu.memory_space<vmem>>) attributes {dimension_semantics = [#tpu.dimension_semantics<parallel>], iteration_bounds = array<i64: 2>, scalar_prefetch = 0 : i64, scratch_operands = 0 : i64, tpu.core_type = #tpu.core_type<tc>, window_params = [{transform_indices = @transform_0, window_bounds = array<i64: 32, 16>}, {transform_indices = @transform_1, window_bounds = array<i64: 32, 16>}, {pipeline_mode = #tpu.pipeline_mode<synchronous>, transform_indices = @transform_2, window_bounds = array<i64: 16, 128>}, {pipeline_mode = #tpu.pipeline_mode<synchronous>, transform_indices = @transform_3, window_bounds = array<i64: 16, 128>}, {pipeline_mode = #tpu.pipeline_mode<synchronous>, transform_indices = @transform_4, window_bounds = array<i64: 1, 128>}, {pipeline_mode = #tpu.pipeline_mode<synchronous>, transform_indices = @transform_5, window_bounds = array<i64: 128, 128>}, {pipeline_mode = #tpu.pipeline_mode<synchronous>, transform_indices = @transform_6, window_bounds = array<i64: 1, 128>}, {pipeline_mode = #tpu.pipeline_mode<synchronous>, transform_indices = @transform_7, window_bounds = array<i64: 128, 128>}, {pipeline_mode = #tpu.pipeline_mode<synchronous>, transform_indices = @transform_8, window_bounds = array<i64: 1, 128>}, {transform_indices = @transform_9, window_bounds = array<i64: 32, 128>}]} {
    %c0 = arith.constant 0 : index
    %c0_0 = arith.constant 0 : index
    %0 = vector.load %arg1[%c0, %c0_0] : memref<32x16xf32, #tpu.memory_space<vmem>>, vector<32x16xf32>
    %1 = arith.truncf %0 : vector<32x16xf32> to vector<32x16xbf16>
    %c0_1 = arith.constant 0 : index
    %c0_2 = arith.constant 0 : index
    %2 = vector.load %arg3[%c0_1, %c0_2] : memref<16x128xbf16, #tpu.memory_space<vmem>>, vector<16x128xbf16>
    %cst = arith.constant dense<0.000000e+00> : vector<32x128xf32>
    %3 = tpu.matmul %1, %2, %cst {dimension_numbers = #tpu.dot_dimension_numbers<[1], [0], [0], [1], [0, 0, 1, 1], [], []>} : vector<32x16xbf16>, vector<16x128xbf16>, vector<32x128xf32> -> vector<32x128xf32>
    %c0_3 = arith.constant 0 : index
    %c0_4 = arith.constant 0 : index
    %4 = vector.load %arg2[%c0_3, %c0_4] : memref<32x16xf32, #tpu.memory_space<vmem>>, vector<32x16xf32>
    %5 = arith.truncf %4 : vector<32x16xf32> to vector<32x16xbf16>
    %c0_5 = arith.constant 0 : index
    %c0_6 = arith.constant 0 : index
    %6 = vector.load %arg4[%c0_5, %c0_6] : memref<16x128xbf16, #tpu.memory_space<vmem>>, vector<16x128xbf16>
    %cst_7 = arith.constant dense<0.000000e+00> : vector<32x128xf32>
    %7 = tpu.matmul %5, %6, %cst_7 {dimension_numbers = #tpu.dot_dimension_numbers<[1], [0], [0], [1], [0, 0, 1, 1], [], []>} : vector<32x16xbf16>, vector<16x128xbf16>, vector<32x128xf32> -> vector<32x128xf32>
    %8 = arith.addf %3, %7 : vector<32x128xf32>
    %c0_8 = arith.constant 0 : index
    %c0_9 = arith.constant 0 : index
    %9 = vector.load %arg5[%c0_8, %c0_9] : memref<1x128xf32, #tpu.memory_space<vmem>>, vector<1x128xf32>
    %10 = vector.broadcast %9 : vector<1x128xf32> to vector<32x128xf32>
    %11 = arith.addf %8, %10 : vector<32x128xf32>
    %cst_10 = arith.constant 0.000000e+00 : f32
    %12 = vector.broadcast %cst_10 : f32 to vector<32x128xf32>
    %13 = arith.maximumf %11, %12 : vector<32x128xf32>
    %14 = arith.truncf %13 : vector<32x128xf32> to vector<32x128xbf16>
    %c0_11 = arith.constant 0 : index
    %c0_12 = arith.constant 0 : index
    %15 = vector.load %arg6[%c0_11, %c0_12] : memref<128x128xbf16, #tpu.memory_space<vmem>>, vector<128x128xbf16>
    %cst_13 = arith.constant dense<0.000000e+00> : vector<32x128xf32>
    %16 = tpu.matmul %14, %15, %cst_13 {dimension_numbers = #tpu.dot_dimension_numbers<[1], [0], [0], [1], [0, 0, 1, 1], [], []>} : vector<32x128xbf16>, vector<128x128xbf16>, vector<32x128xf32> -> vector<32x128xf32>
    %c0_14 = arith.constant 0 : index
    %c0_15 = arith.constant 0 : index
    %17 = vector.load %arg7[%c0_14, %c0_15] : memref<1x128xf32, #tpu.memory_space<vmem>>, vector<1x128xf32>
    %18 = vector.broadcast %17 : vector<1x128xf32> to vector<32x128xf32>
    %19 = arith.addf %16, %18 : vector<32x128xf32>
    %cst_16 = arith.constant 0.000000e+00 : f32
    %20 = vector.broadcast %cst_16 : f32 to vector<32x128xf32>
    %21 = arith.maximumf %19, %20 : vector<32x128xf32>
    %22 = arith.truncf %21 : vector<32x128xf32> to vector<32x128xbf16>
    %c0_17 = arith.constant 0 : index
    %c0_18 = arith.constant 0 : index
    %23 = vector.load %arg8[%c0_17, %c0_18] : memref<128x128xbf16, #tpu.memory_space<vmem>>, vector<128x128xbf16>
    %cst_19 = arith.constant dense<0.000000e+00> : vector<32x128xf32>
    %24 = tpu.matmul %22, %23, %cst_19 {dimension_numbers = #tpu.dot_dimension_numbers<[1], [0], [0], [1], [0, 0, 1, 1], [], []>} : vector<32x128xbf16>, vector<128x128xbf16>, vector<32x128xf32> -> vector<32x128xf32>
    %c0_20 = arith.constant 0 : index
    %c0_21 = arith.constant 0 : index
    %25 = vector.load %arg9[%c0_20, %c0_21] : memref<1x128xf32, #tpu.memory_space<vmem>>, vector<1x128xf32>
    %26 = vector.broadcast %25 : vector<1x128xf32> to vector<32x128xf32>
    %27 = arith.addf %24, %26 : vector<32x128xf32>
    %28 = math.tanh %27 : vector<32x128xf32>
    %c0_22 = arith.constant 0 : index
    %c0_23 = arith.constant 0 : index
    %29 = vector.load %arg10[%c0_22, %c0_23] : memref<32x128xf32, #tpu.memory_space<vmem>>, vector<32x128xf32>
    tpu.vector_store %arg10[%c0_22, %c0_23], %28 {strides = array<i32>} : memref<32x128xf32, #tpu.memory_space<vmem>>, vector<32x128xf32>,
    return
  }
  func.func @transform_0(%arg0: i32) -> (i32, i32) {
    %c0_i32 = arith.constant 0 : i32
    %c0_i32_0 = arith.constant 0 : i32
    return %arg0, %c0_i32 : i32, i32
  }
  func.func @transform_1(%arg0: i32) -> (i32, i32) {
    %c0_i32 = arith.constant 0 : i32
    %c0_i32_0 = arith.constant 0 : i32
    return %arg0, %c0_i32 : i32, i32
  }
  func.func @transform_2(%arg0: i32) -> (i32, i32) {
    %c0_i32 = arith.constant 0 : i32
    %c0_i32_0 = arith.constant 0 : i32
    %c0_i32_1 = arith.constant 0 : i32
    return %c0_i32, %c0_i32_0 : i32, i32
  }
  func.func @transform_3(%arg0: i32) -> (i32, i32) {
    %c0_i32 = arith.constant 0 : i32
    %c0_i32_0 = arith.constant 0 : i32
    %c0_i32_1 = arith.constant 0 : i32
    return %c0_i32, %c0_i32_0 : i32, i32
  }
  func.func @transform_4(%arg0: i32) -> (i32, i32) {
    %c0_i32 = arith.constant 0 : i32
    %c0_i32_0 = arith.constant 0 : i32
    %c0_i32_1 = arith.constant 0 : i32
    return %c0_i32, %c0_i32_0 : i32, i32
  }
  func.func @transform_5(%arg0: i32) -> (i32, i32) {
    %c0_i32 = arith.constant 0 : i32
    %c0_i32_0 = arith.constant 0 : i32
    %c0_i32_1 = arith.constant 0 : i32
    return %c0_i32, %c0_i32_0 : i32, i32
  }
  func.func @transform_6(%arg0: i32) -> (i32, i32) {
    %c0_i32 = arith.constant 0 : i32
    %c0_i32_0 = arith.constant 0 : i32
    %c0_i32_1 = arith.constant 0 : i32
    return %c0_i32, %c0_i32_0 : i32, i32
  }
  func.func @transform_7(%arg0: i32) -> (i32, i32) {
    %c0_i32 = arith.constant 0 : i32
    %c0_i32_0 = arith.constant 0 : i32
    %c0_i32_1 = arith.constant 0 : i32
    return %c0_i32, %c0_i32_0 : i32, i32
  }
  func.func @transform_8(%arg0: i32) -> (i32, i32) {
    %c0_i32 = arith.constant 0 : i32
    %c0_i32_0 = arith.constant 0 : i32
    %c0_i32_1 = arith.constant 0 : i32
    return %c0_i32, %c0_i32_0 : i32, i32
  }
  func.func @transform_9(%arg0: i32) -> (i32, i32) {
    %c0_i32 = arith.constant 0 : i32
    %c0_i32_0 = arith.constant 0 : i32
    return %arg0, %c0_i32 : i32, i32
  }
}

</mosaic_0001>

<llo_original>
// kernel: tpu_custom_call.1
$region0: #{tpu_custom_call.1}
  #allocation0 [shape = 'u32[]', space=smem, size = 0x4, offset = 0x4, fixed_abs, tag = 'smem constant byte address 0x4 - core index']
  #allocation1 [shape = 'u32[72,128]{1,0:T(1,128)}', space=vmem, size = 0x9000, scoped, tag = 'internal scratch']
  %s0 = inlined_call_operand.vmem [shape: f32[64,16], index: 0, kind: input, shape index: {}]
  %s1 = inlined_call_operand.vmem [shape: f32[64,16], index: 1, kind: input, shape index: {}]
  %s2 = inlined_call_operand.vmem [shape: bf16[16,128], index: 2, kind: input, shape index: {}]
  %s3 = inlined_call_operand.vmem [shape: bf16[16,128], index: 3, kind: input, shape index: {}]
  %s4 = inlined_call_operand.vmem [shape: f32[1,128], index: 4, kind: input, shape index: {}]
  %s5 = inlined_call_operand.vmem [shape: bf16[128,128], index: 5, kind: input, shape index: {}]
  %s6 = inlined_call_operand.vmem [shape: f32[1,128], index: 6, kind: input, shape index: {}]
  %s7 = inlined_call_operand.vmem [shape: bf16[128,128], index: 7, kind: input, shape index: {}]
  %s8 = inlined_call_operand.vmem [shape: f32[1,128], index: 8, kind: input, shape index: {}]
  %s9 = inlined_call_operand.hbm [shape: f32[64,128], index: 9, kind: output, shape index: {}]
  %s10 = sld [smem:[#allocation0]]
  $region69: #{tpu_custom_call.1} parent=0
    _
  %s12 = ssub.s32 1, %s10
  %s13 = scalar_select 0, %s12, %s10
  $region1: #{tpu_custom_call.1} parent=0
    #allocation2 [shape = 'u8[32768]{0}', space=vmem, size = 0x8000, scoped, tag = 'output window, operand 0']
    #allocation3 [shape = 's32[2]{0}', space=sflag, size = 0x8, scoped, tag = 'scoped memory for tpu_custom_call.1']
    %14 = vsyncpa [#allocation3], 0
    %s15 = scalar_lea.sflag [#allocation3], 1
    %16 = vsyncpa %s15, 0
    loop: start=0, step=1, limit=4
    $region2: #{tpu_custom_call.1} parent=1 // loop_pre_header
      _
    $region3: #{tpu_custom_call.1} parent=1 // loop_header
      %s18 = sphi 0, %s22
      %p19 = scmp.ge.s32.totalorder %s18, 4
      %s28 = sphi 0, %s30
      %s31 = sphi 0, %s28
      %s32 = sphi 0, %s31
      %s48 = sphi 0, %s32
      %s54 = sphi 0, %s56
      %s57 = sphi 0, %s54
      %s58 = sphi 0, %s57
      %s74 = sphi 0, %s58
      %s78 = sphi 0, %s78
      %s80 = sphi 0, %s78
      %s81 = sphi 0, %s80
      %s95 = sphi 0, %s81
      %s99 = sphi 0, %s99
      %s101 = sphi 0, %s99
      %s102 = sphi 0, %s101
      %s116 = sphi 0, %s102
      %s120 = sphi 0, %s120
      %s122 = sphi 0, %s120
      %s123 = sphi 0, %s122
      %s137 = sphi 0, %s123
      %s141 = sphi 0, %s141
      %s143 = sphi 0, %s141
      %s144 = sphi 0, %s143
      %s158 = sphi 0, %s144
      %s162 = sphi 0, %s162
      %s164 = sphi 0, %s162
      %s165 = sphi 0, %s164
      %s179 = sphi 0, %s165
      %s183 = sphi 0, %s183
      %s185 = sphi 0, %s183
      %s186 = sphi 0, %s185
      %s200 = sphi 0, %s186
      %s204 = sphi 0, %s204
      %s206 = sphi 0, %s204
      %s207 = sphi 0, %s206
      %s221 = sphi 0, %s207
      %s227 = sphi 0, %s229
      %s230 = sphi 0, %s227
      %s231 = sphi 0, %s230
      %s247 = sphi 0, %s231
    $region4: #{tpu_custom_call.1} parent=1 // loop_header_branch
      %21 = sbr.rel (%p19) target = $region8
    $region5: #{tpu_custom_call.1} parent=1 // loop_body
      %s23 = ssub.s32 %s18, 1
      %s24 = ssub.s32 %s18, 2
      %s25 = sadd.s32 %s18, 1
      %s26 = ssub.s32 %s18, %s25
      %p27 = scmp.eq.s32.totalorder %s26, 0
      %s29 = sadd.s32 %s28, 1
      %s30 = scalar_select %p27, %s28, %s29
      %p33 = pneg %p27
      %p34 = scmp.eq.s32.totalorder %s18, 1
      %p35 = por %p33, %p34
      %p36 = scmp.ne.s32.totalorder %s28, %s31
      %p37 = scmp.eq.s32.totalorder %s18, 0
      %p38 = por %p36, %p37
      %p39 = scmp.ne.s32.totalorder %s28, %s31
      %p40 = scmp.eq.s32.totalorder %s23, 1
      %p41 = por %p39, %p40
      %p42 = scmp.ne.s32.totalorder %s31, %s32
      %p43 = scmp.eq.s32.totalorder %s23, 0
      %p44 = por %p42, %p43
      %p45 = scmp.ne.s32.totalorder %s31, %s32
      %p46 = scmp.eq.s32.totalorder %s24, 1
      %p47 = por %p45, %p46
      %p49 = scmp.ne.s32.totalorder %s32, %s48
      %p50 = scmp.eq.s32.totalorder %s24, 0
      %p51 = por %p49, %p50
      %s52 = ssub.s32 %s18, %s25
      %p53 = scmp.eq.s32.totalorder %s52, 0
      %s55 = sadd.s32 %s54, 1
      %s56 = scalar_select %p53, %s54, %s55
      %p59 = pneg %p53
      %p60 = scmp.eq.s32.totalorder %s18, 1
      %p61 = por %p59, %p60
      %p62 = scmp.ne.s32.totalorder %s54, %s57
      %p63 = scmp.eq.s32.totalorder %s18, 0
      %p64 = por %p62, %p63
      %p65 = scmp.ne.s32.totalorder %s54, %s57
      %p66 = scmp.eq.s32.totalorder %s23, 1
      %p67 = por %p65, %p66
      %p68 = scmp.ne.s32.totalorder %s57, %s58
      %p69 = scmp.eq.s32.totalorder %s23, 0
      %p70 = por %p68, %p69
      %p71 = scmp.ne.s32.totalorder %s57, %s58
      %p72 = scmp.eq.s32.totalorder %s24, 1
      %p73 = por %p71, %p72
      %p75 = scmp.ne.s32.totalorder %s58, %s74
      %p76 = scmp.eq.s32.totalorder %s24, 0
      %p77 = por %p75, %p76
      %s79 = sadd.s32 %s78, 1
      %p82 = scmp.eq.s32.totalorder %s18, 1
      %p83 = scmp.ne.s32.totalorder %s78, %s80
      %p84 = scmp.eq.s32.totalorder %s18, 0
      %p85 = por %p83, %p84
      %p86 = scmp.ne.s32.totalorder %s78, %s80
      %p87 = scmp.eq.s32.totalorder %s23, 1
      %p88 = por %p86, %p87
      %p89 = scmp.ne.s32.totalorder %s80, %s81
      %p90 = scmp.eq.s32.totalorder %s23, 0
      %p91 = por %p89, %p90
      %p92 = scmp.ne.s32.totalorder %s80, %s81
      %p93 = scmp.eq.s32.totalorder %s24, 1
      %p94 = por %p92, %p93
      %p96 = scmp.ne.s32.totalorder %s81, %s95
      %p97 = scmp.eq.s32.totalorder %s24, 0
      %p98 = por %p96, %p97
      %s100 = sadd.s32 %s99, 1
      %p103 = scmp.eq.s32.totalorder %s18, 1
      %p104 = scmp.ne.s32.totalorder %s99, %s101
      %p105 = scmp.eq.s32.totalorder %s18, 0
      %p106 = por %p104, %p105
      %p107 = scmp.ne.s32.totalorder %s99, %s101
      %p108 = scmp.eq.s32.totalorder %s23, 1
      %p109 = por %p107, %p108
      %p110 = scmp.ne.s32.totalorder %s101, %s102
      %p111 = scmp.eq.s32.totalorder %s23, 0
      %p112 = por %p110, %p111
      %p113 = scmp.ne.s32.totalorder %s101, %s102
      %p114 = scmp.eq.s32.totalorder %s24, 1
      %p115 = por %p113, %p114
      %p117 = scmp.ne.s32.totalorder %s102, %s116
      %p118 = scmp.eq.s32.totalorder %s24, 0
      %p119 = por %p117, %p118
      %s121 = sadd.s32 %s120, 1
      %p124 = scmp.eq.s32.totalorder %s18, 1
      %p125 = scmp.ne.s32.totalorder %s120, %s122
      %p126 = scmp.eq.s32.totalorder %s18, 0
      %p127 = por %p125, %p126
      %p128 = scmp.ne.s32.totalorder %s120, %s122
      %p129 = scmp.eq.s32.totalorder %s23, 1
      %p130 = por %p128, %p129
      %p131 = scmp.ne.s32.totalorder %s122, %s123
      %p132 = scmp.eq.s32.totalorder %s23, 0
      %p133 = por %p131, %p132
      %p134 = scmp.ne.s32.totalorder %s122, %s123
      %p135 = scmp.eq.s32.totalorder %s24, 1
      %p136 = por %p134, %p135
      %p138 = scmp.ne.s32.totalorder %s123, %s137
      %p139 = scmp.eq.s32.totalorder %s24, 0
      %p140 = por %p138, %p139
      %s142 = sadd.s32 %s141, 1
      %p145 = scmp.eq.s32.totalorder %s18, 1
      %p146 = scmp.ne.s32.totalorder %s141, %s143
      %p147 = scmp.eq.s32.totalorder %s18, 0
      %p148 = por %p146, %p147
      %p149 = scmp.ne.s32.totalorder %s141, %s143
      %p150 = scmp.eq.s32.totalorder %s23, 1
      %p151 = por %p149, %p150
      %p152 = scmp.ne.s32.totalorder %s143, %s144
      %p153 = scmp.eq.s32.totalorder %s23, 0
      %p154 = por %p152, %p153
      %p155 = scmp.ne.s32.totalorder %s143, %s144
      %p156 = scmp.eq.s32.totalorder %s24, 1
      %p157 = por %p155, %p156
      %p159 = scmp.ne.s32.totalorder %s144, %s158
      %p160 = scmp.eq.s32.totalorder %s24, 0
      %p161 = por %p159, %p160
      %s163 = sadd.s32 %s162, 1
      %p166 = scmp.eq.s32.totalorder %s18, 1
      %p167 = scmp.ne.s32.totalorder %s162, %s164
      %p168 = scmp.eq.s32.totalorder %s18, 0
      %p169 = por %p167, %p168
      %p170 = scmp.ne.s32.totalorder %s162, %s164
      %p171 = scmp.eq.s32.totalorder %s23, 1
      %p172 = por %p170, %p171
      %p173 = scmp.ne.s32.totalorder %s164, %s165
      %p174 = scmp.eq.s32.totalorder %s23, 0
      %p175 = por %p173, %p174
      %p176 = scmp.ne.s32.totalorder %s164, %s165
      %p177 = scmp.eq.s32.totalorder %s24, 1
      %p178 = por %p176, %p177
      %p180 = scmp.ne.s32.totalorder %s165, %s179
      %p181 = scmp.eq.s32.totalorder %s24, 0
      %p182 = por %p180, %p181
      %s184 = sadd.s32 %s183, 1
      %p187 = scmp.eq.s32.totalorder %s18, 1
      %p188 = scmp.ne.s32.totalorder %s183, %s185
      %p189 = scmp.eq.s32.totalorder %s18, 0
      %p190 = por %p188, %p189
      %p191 = scmp.ne.s32.totalorder %s183, %s185
      %p192 = scmp.eq.s32.totalorder %s23, 1
      %p193 = por %p191, %p192
      %p194 = scmp.ne.s32.totalorder %s185, %s186
      %p195 = scmp.eq.s32.totalorder %s23, 0
      %p196 = por %p194, %p195
      %p197 = scmp.ne.s32.totalorder %s185, %s186
      %p198 = scmp.eq.s32.totalorder %s24, 1
      %p199 = por %p197, %p198
      %p201 = scmp.ne.s32.totalorder %s186, %s200
      %p202 = scmp.eq.s32.totalorder %s24, 0
      %p203 = por %p201, %p202
      %s205 = sadd.s32 %s204, 1
      %p208 = scmp.eq.s32.totalorder %s18, 1
      %p209 = scmp.ne.s32.totalorder %s204, %s206
      %p210 = scmp.eq.s32.totalorder %s18, 0
      %p211 = por %p209, %p210
      %p212 = scmp.ne.s32.totalorder %s204, %s206
      %p213 = scmp.eq.s32.totalorder %s23, 1
      %p214 = por %p212, %p213
      %p215 = scmp.ne.s32.totalorder %s206, %s207
      %p216 = scmp.eq.s32.totalorder %s23, 0
      %p217 = por %p215, %p216
      %p218 = scmp.ne.s32.totalorder %s206, %s207
      %p219 = scmp.eq.s32.totalorder %s24, 1
      %p220 = por %p218, %p219
      %p222 = scmp.ne.s32.totalorder %s207, %s221
      %p223 = scmp.eq.s32.totalorder %s24, 0
      %p224 = por %p222, %p223
      %s225 = ssub.s32 %s18, %s25
      %p226 = scmp.eq.s32.totalorder %s225, 0
      %s228 = sadd.s32 %s227, 1
      %s229 = scalar_select %p226, %s227, %s228
      %p232 = pneg %p226
      %p233 = scmp.eq.s32.totalorder %s18, 1
      %p234 = por %p232, %p233
      %p235 = scmp.ne.s32.totalorder %s227, %s230
      %p236 = scmp.eq.s32.totalorder %s18, 0
      %p237 = por %p235, %p236
      %p238 = scmp.ne.s32.totalorder %s227, %s230
      %p239 = scmp.eq.s32.totalorder %s23, 1
      %p240 = por %p238, %p239
      %p241 = scmp.ne.s32.totalorder %s230, %s231
      %p242 = scmp.eq.s32.totalorder %s23, 0
      %p243 = por %p241, %p242
      %p244 = scmp.ne.s32.totalorder %s230, %s231
      %p245 = scmp.eq.s32.totalorder %s24, 1
      %p246 = por %p244, %p245
      %p248 = scmp.ne.s32.totalorder %s231, %s247
      %p249 = scmp.eq.s32.totalorder %s24, 0
      %p250 = por %p248, %p249
      %p251 = scmp.le.s32.totalorder 1, %s18
      %p252 = scmp.lt.s32.totalorder %s18, 3
      %p253 = pnand %p251, %p252
      %p254 = pneg %p253
      // Predicated region
      $region9: #{tpu_custom_call.1} parent=5 // pred_check
        _
      $region10: #{tpu_custom_call.1} parent=5 // pred_check_branch
        %256 = sbr.rel (%p253) target = $region12
      $region11: #{tpu_custom_call.1} parent=5 // pred_region
        %s257 = ssub.s32 %s18, 1
        // Predicated region
        $region13: #{tpu_custom_call.1} parent=11 // pred_check
          %p258 = pneg %p91
        $region14: #{tpu_custom_call.1} parent=11 // pred_check_branch
          %260 = sbr.rel (%p258) target = $region16
        $region15: #{tpu_custom_call.1} parent=11 // pred_region
          _
        $region16: #{tpu_custom_call.1} parent=11 // pred_fallthru
          _
        // Predicated region
        $region17: #{tpu_custom_call.1} parent=11 // pred_check
          %p261 = pneg %p112
        $region18: #{tpu_custom_call.1} parent=11 // pred_check_branch
          %263 = sbr.rel (%p261) target = $region20
        $region19: #{tpu_custom_call.1} parent=11 // pred_region
          _
        $region20: #{tpu_custom_call.1} parent=11 // pred_fallthru
          _
        // Predicated region
        $region21: #{tpu_custom_call.1} parent=11 // pred_check
          %p264 = pneg %p133
        $region22: #{tpu_custom_call.1} parent=11 // pred_check_branch
          %266 = sbr.rel (%p264) target = $region24
        $region23: #{tpu_custom_call.1} parent=11 // pred_region
          _
        $region24: #{tpu_custom_call.1} parent=11 // pred_fallthru
          _
        // Predicated region
        $region25: #{tpu_custom_call.1} parent=11 // pred_check
          %p267 = pneg %p154
        $region26: #{tpu_custom_call.1} parent=11 // pred_check_branch
          %269 = sbr.rel (%p267) target = $region28
        $region27: #{tpu_custom_call.1} parent=11 // pred_region
          _
        $region28: #{tpu_custom_call.1} parent=11 // pred_fallthru
          _
        // Predicated region
        $region29: #{tpu_custom_call.1} parent=11 // pred_check
          %p270 = pneg %p175
        $region30: #{tpu_custom_call.1} parent=11 // pred_check_branch
          %272 = sbr.rel (%p270) target = $region32
        $region31: #{tpu_custom_call.1} parent=11 // pred_region
          _
        $region32: #{tpu_custom_call.1} parent=11 // pred_fallthru
          _
        // Predicated region
        $region33: #{tpu_custom_call.1} parent=11 // pred_check
          %p273 = pneg %p196
        $region34: #{tpu_custom_call.1} parent=11 // pred_check_branch
          %275 = sbr.rel (%p273) target = $region36
        $region35: #{tpu_custom_call.1} parent=11 // pred_region
          _
        $region36: #{tpu_custom_call.1} parent=11 // pred_fallthru
          _
        // Predicated region
        $region37: #{tpu_custom_call.1} parent=11 // pred_check
          %p276 = pneg %p217
        $region38: #{tpu_custom_call.1} parent=11 // pred_check_branch
          %278 = sbr.rel (%p276) target = $region40
        $region39: #{tpu_custom_call.1} parent=11 // pred_region
          _
        $region40: #{tpu_custom_call.1} parent=11 // pred_fallthru
          _
      $region12: #{tpu_custom_call.1} parent=5 // pred_fallthru
        _
      %p279 = scmp.lt.s32.totalorder %s18, 2
      // Predicated region
      $region41: #{tpu_custom_call.1} parent=5 // pred_check
        %p280 = pneg %p279
      $region42: #{tpu_custom_call.1} parent=5 // pred_check_branch
        %282 = sbr.rel (%p280) target = $region44
      $region43: #{tpu_custom_call.1} parent=5 // pred_region
        // Predicated region
        $region45: #{tpu_custom_call.1} parent=43 // pred_check
          %p283 = pneg %p38
        $region46: #{tpu_custom_call.1} parent=43 // pred_check_branch
          %285 = sbr.rel (%p283) target = $region48
        $region47: #{tpu_custom_call.1} parent=43 // pred_region
          %s286 = smul.u32 4, %s18
          %p287 = scmp.lt.s32.totalorder %s286, 7
          %s288 = scalar_select %p287, %s286, 7
          %s289 = smul.addr %s288, 8
          %s290 = scalar_lea.vmem %s0, %s289
          %s291 = smul.u32 4, %s18
        $region48: #{tpu_custom_call.1} parent=43 // pred_fallthru
          _
        // Predicated region
        $region49: #{tpu_custom_call.1} parent=43 // pred_check
          %p292 = pneg %p64
        $region50: #{tpu_custom_call.1} parent=43 // pred_check_branch
          %294 = sbr.rel (%p292) target = $region52
        $region51: #{tpu_custom_call.1} parent=43 // pred_region
          %s295 = smul.u32 4, %s18
          %p296 = scmp.lt.s32.totalorder %s295, 7
          %s297 = scalar_select %p296, %s295, 7
          %s298 = smul.addr %s297, 8
          %s299 = scalar_lea.vmem %s1, %s298
          %s300 = smul.u32 4, %s18
        $region52: #{tpu_custom_call.1} parent=43 // pred_fallthru
          _
      $region44: #{tpu_custom_call.1} parent=5 // pred_fallthru
        _
      %p301 = scmp.le.s32.totalorder 1, %s18
      %p302 = scmp.lt.s32.totalorder %s18, 3
      %p303 = pnand %p301, %p302
      %p304 = pneg %p303
      // Predicated region
      $region53: #{tpu_custom_call.1} parent=5 // pred_check
        _
      $region54: #{tpu_custom_call.1} parent=5 // pred_check_branch
        %306 = sbr.rel (%p303) target = $region56
      $region55: #{tpu_custom_call.1} parent=5 // pred_region
        %s307 = ssub.s32 %s18, 1
        %s308 = smul.u32 4, %s23
        %p309 = scmp.lt.s32.totalorder %s308, 7
        %s310 = scalar_select %p309, %s308, 7
        %s311 = smul.addr %s310, 8
        %s312 = scalar_lea.vmem %s0, %s311
        %p313 = pneg %p44
        %p314 = pneg %p41
        %s315 = smul.u32 4, %s23
        %p316 = scmp.lt.s32.totalorder %s315, 7
        %s317 = scalar_select %p316, %s315, 7
        %s318 = smul.addr %s317, 8
        %s319 = scalar_lea.vmem %s1, %s318
        %p320 = pneg %p70
        %p321 = pneg %p67
        %p322 = pneg %p91
        %p323 = pneg %p88
        %p324 = pneg %p112
        %p325 = pneg %p109
        %p326 = pneg %p133
        %p327 = pneg %p130
        %p328 = pneg %p154
        %p329 = pneg %p151
        %p330 = pneg %p175
        %p331 = pneg %p172
        %p332 = pneg %p196
        %p333 = pneg %p193
        %p334 = pneg %p217
        %p335 = pneg %p214
        %p336 = pneg %p243
        %p337 = pneg %p240
        %s338 = sand.u32 %s230, 1
        %s339 = scalar_lea.sflag [#allocation3], %s338
        %s340 = sand.u32 %s230, 1
        %s341 = smul.addr %s340, 32
        %s342 = scalar_lea.vmem [#allocation2], %s341
        %s343 = smul.u32 4, %s23
        %p344 = scmp.lt.s32.totalorder %s343, 7
        %s345 = scalar_select %p344, %s343, 7
        %s346 = smul.addr %s345, 8
        %s347 = scalar_lea.vmem %s0, %s346
        %s348 = smul.u32 4, %s23
        %s349 = smul.u32 4, %s23
        %p350 = scmp.lt.s32.totalorder %s349, 7
        %s351 = scalar_select %p350, %s349, 7
        %s352 = smul.addr %s351, 8
        %s353 = scalar_lea.vmem %s1, %s352
        %s354 = smul.u32 4, %s23
        %s355 = smul.u32 4, %s23
        %v357 = vld [vmem:[%s347] sm:$0xff]
        %v358 = vld [vmem:[%s347 + $0x8] sm:$0xff]
        %v359 = vld [vmem:[%s347 + $0x10] sm:$0xff]
        %v360 = vld [vmem:[%s347 + $0x18] sm:$0xff]
        %v361 = vpack.c.bf16 %v358, %v357
        %v362 = vpack.c.bf16 %v360, %v359
        %v363 = vld [vmem:[%s2] sm:$0xf]
        %v364 = vld [vmem:[%s2 + $0x4] sm:$0xf]
        %v365 = vld [vmem:[%s353] sm:$0xff]
        %v366 = vld [vmem:[%s353 + $0x8] sm:$0xff]
        %v367 = vld [vmem:[%s353 + $0x10] sm:$0xff]
        %v368 = vld [vmem:[%s353 + $0x18] sm:$0xff]
        %v369 = vpack.c.bf16 %v366, %v365
        %v370 = vpack.c.bf16 %v368, %v367
        %v371 = vld [vmem:[%s3] sm:$0xf]
        %v372 = vld [vmem:[%s3 + $0x4] sm:$0xf]
        %v375 = vunpack.c.l.b16 %v371
        %v376 = vunpack.c.l.b16 %v372
        %v377 = vpack.c.b16 %v376, %v375
        %vm379 = vcmask 130048
        %v381 = vsel %vm379, %v369, 0
        %v384 = vsel %vm379, %v370, 0
        %386 = vmatpush.bf16.msra.mxu0 0
        %387 = vmatpush.bf16.msra.mxu0 0
        %388 = vmatpush.bf16.msra.mxu0 0
        %389 = vmatpush.bf16.msra.mxu0 0
        %390 = vmatpush.bf16.msra.mxu0 0
        %391 = vmatpush.bf16.msra.mxu0 0
        %392 = vmatpush.bf16.msra.mxu0 0
        %393 = vmatpush.bf16.msra.mxu0 %v377
        %394 = vmatmul.bf16.gmra.mxu0 %v381
        %v395 = vpop.f32.mrf.mxu0
        %v396 = vadd.f32 0.0, %v395
        %v397 = vpop.f32.mrf.mxu0
        %v398 = vadd.f32 0.0, %v397
        %399 = vmatmul.bf16.gmra.mxu0 %v384
        %v400 = vpop.f32.mrf.mxu0
        %v401 = vadd.f32 0.0, %v400
        %v402 = vpop.f32.mrf.mxu0
        %v403 = vadd.f32 0.0, %v402
        %404 = vdwg.mxu0
        %v407 = vunpack.c.l.b16 %v363
        %v408 = vunpack.c.l.b16 %v364
        %v409 = vpack.c.b16 %v408, %v407
        %v412 = vsel %vm379, %v361, 0
        %v415 = vsel %vm379, %v362, 0
        %417 = vmatpush.bf16.msra.mxu0 0
        %418 = vmatpush.bf16.msra.mxu0 0
        %419 = vmatpush.bf16.msra.mxu0 0
        %420 = vmatpush.bf16.msra.mxu0 0
        %421 = vmatpush.bf16.msra.mxu0 0
        %422 = vmatpush.bf16.msra.mxu0 0
        %423 = vmatpush.bf16.msra.mxu0 0
        %424 = vmatpush.bf16.msra.mxu0 %v409
        %425 = vmatmul.bf16.gmra.mxu0 %v412
        %v426 = vpop.f32.mrf.mxu0
        %v427 = vadd.f32 %v396, %v426
        %v428 = vpop.f32.mrf.mxu0
        %v429 = vadd.f32 %v398, %v428
        %430 = vmatmul.bf16.gmra.mxu0 %v415
        %v431 = vpop.f32.mrf.mxu0
        %v432 = vadd.f32 %v401, %v431
        %v433 = vpop.f32.mrf.mxu0
        %v434 = vadd.f32 %v403, %v433
        %435 = vdwg.mxu0
        %v436 = vld [vmem:[%s4] sm:$0x1]
        %v438 = vperm.slane %v436, 0
        %v440 = vadd.f32 %v427, %v438
        %v441 = vadd.f32 %v429, %v438
        %v442 = vadd.f32 %v432, %v438
        %v443 = vadd.f32 %v434, %v438
        %v444 = vmax.f32 %v440, 0.0
        %v445 = vmax.f32 %v441, 0.0
        %v446 = vmax.f32 %v442, 0.0
        %v447 = vmax.f32 %v443, 0.0
        %v448 = vpack.c.bf16 %v445, %v444
        %v449 = vpack.c.bf16 %v447, %v446
        %v450 = vld [vmem:[%s5] sm:$0xf]
        %v451 = vld [vmem:[%s5 + $0x4] sm:$0xf]
        %v452 = vld [vmem:[%s5 + $0x8] sm:$0xf]
        %v453 = vld [vmem:[%s5 + $0xc] sm:$0xf]
        %v454 = vld [vmem:[%s5 + $0x10] sm:$0xf]
        %v455 = vld [vmem:[%s5 + $0x14] sm:$0xf]
        %v456 = vld [vmem:[%s5 + $0x18] sm:$0xf]
        %v457 = vld [vmem:[%s5 + $0x1c] sm:$0xf]
        %v458 = vld [vmem:[%s5 + $0x20] sm:$0xf]
        %v459 = vld [vmem:[%s5 + $0x24] sm:$0xf]
        %v460 = vld [vmem:[%s5 + $0x28] sm:$0xf]
        %v461 = vld [vmem:[%s5 + $0x2c] sm:$0xf]
        %v462 = vld [vmem:[%s5 + $0x30] sm:$0xf]
        %v463 = vld [vmem:[%s5 + $0x34] sm:$0xf]
        %v464 = vld [vmem:[%s5 + $0x38] sm:$0xf]
        %v465 = vld [vmem:[%s5 + $0x3c] sm:$0xf]
        %v466 = vld [vmem:[%s6] sm:$0x1]
        %v468 = vperm.slane %v466, 0
        %v486 = vunpack.c.l.b16 %v450
        %v487 = vunpack.c.l.b16 %v451
        %v488 = vunpack.c.l.b16 %v452
        %v489 = vunpack.c.l.b16 %v453
        %v490 = vunpack.c.l.b16 %v454
        %v491 = vunpack.c.l.b16 %v455
        %v492 = vunpack.c.l.b16 %v456
        %v493 = vunpack.c.l.b16 %v457
        %v494 = vunpack.c.l.b16 %v458
        %v495 = vunpack.c.l.b16 %v459
        %v496 = vunpack.c.l.b16 %v460
        %v497 = vunpack.c.l.b16 %v461
        %v498 = vunpack.c.l.b16 %v462
        %v499 = vunpack.c.l.b16 %v463
        %v500 = vunpack.c.l.b16 %v464
        %v501 = vunpack.c.l.b16 %v465
        %v502 = vpack.c.b16 %v487, %v486
        %v503 = vpack.c.b16 %v489, %v488
        %v504 = vpack.c.b16 %v491, %v490
        %v505 = vpack.c.b16 %v493, %v492
        %v506 = vpack.c.b16 %v495, %v494
        %v507 = vpack.c.b16 %v497, %v496
        %v508 = vpack.c.b16 %v499, %v498
        %v509 = vpack.c.b16 %v501, %v500
        %518 = vmatpush.bf16.msra.mxu0 %v509
        %519 = vmatpush.bf16.msra.mxu0 %v508
        %520 = vmatpush.bf16.msra.mxu0 %v507
        %521 = vmatpush.bf16.msra.mxu0 %v506
        %522 = vmatpush.bf16.msra.mxu0 %v505
        %523 = vmatpush.bf16.msra.mxu0 %v504
        %524 = vmatpush.bf16.msra.mxu0 %v503
        %525 = vmatpush.bf16.msra.mxu0 %v502
        %526 = vmatmul.bf16.gmra.mxu0 %v448
        %v527 = vpop.f32.mrf.mxu0
        %v528 = vadd.f32 %v468, %v527
        %v529 = vpop.f32.mrf.mxu0
        %v530 = vadd.f32 %v468, %v529
        %531 = vmatmul.bf16.gmra.mxu0 %v449
        %v532 = vpop.f32.mrf.mxu0
        %v533 = vadd.f32 %v468, %v532
        %v534 = vpop.f32.mrf.mxu0
        %v535 = vadd.f32 %v468, %v534
        %536 = vdwg.mxu0
        %v537 = vmax.f32 %v528, 0.0
        %v538 = vmax.f32 %v530, 0.0
        %v539 = vmax.f32 %v533, 0.0
        %v540 = vmax.f32 %v535, 0.0
        %v541 = vpack.c.bf16 %v538, %v537
        %v542 = vpack.c.bf16 %v540, %v539
        %v543 = vld [vmem:[%s7] sm:$0xf]
        %v544 = vld [vmem:[%s7 + $0x4] sm:$0xf]
        %v545 = vld [vmem:[%s7 + $0x8] sm:$0xf]
        %v546 = vld [vmem:[%s7 + $0xc] sm:$0xf]
        %v547 = vld [vmem:[%s7 + $0x10] sm:$0xf]
        %v548 = vld [vmem:[%s7 + $0x14] sm:$0xf]
        %v549 = vld [vmem:[%s7 + $0x18] sm:$0xf]
        %v550 = vld [vmem:[%s7 + $0x1c] sm:$0xf]
        %v551 = vld [vmem:[%s7 + $0x20] sm:$0xf]
        %v552 = vld [vmem:[%s7 + $0x24] sm:$0xf]
        %v553 = vld [vmem:[%s7 + $0x28] sm:$0xf]
        %v554 = vld [vmem:[%s7 + $0x2c] sm:$0xf]
        %v555 = vld [vmem:[%s7 + $0x30] sm:$0xf]
        %v556 = vld [vmem:[%s7 + $0x34] sm:$0xf]
        %v557 = vld [vmem:[%s7 + $0x38] sm:$0xf]
        %v558 = vld [vmem:[%s7 + $0x3c] sm:$0xf]
        %v559 = vld [vmem:[%s8] sm:$0x1]
        %v561 = vperm.slane %v559, 0
        %v579 = vunpack.c.l.b16 %v543
        %v580 = vunpack.c.l.b16 %v544
        %v581 = vunpack.c.l.b16 %v545
        %v582 = vunpack.c.l.b16 %v546
        %v583 = vunpack.c.l.b16 %v547
        %v584 = vunpack.c.l.b16 %v548
        %v585 = vunpack.c.l.b16 %v549
        %v586 = vunpack.c.l.b16 %v550
        %v587 = vunpack.c.l.b16 %v551
        %v588 = vunpack.c.l.b16 %v552
        %v589 = vunpack.c.l.b16 %v553
        %v590 = vunpack.c.l.b16 %v554
        %v591 = vunpack.c.l.b16 %v555
        %v592 = vunpack.c.l.b16 %v556
        %v593 = vunpack.c.l.b16 %v557
        %v594 = vunpack.c.l.b16 %v558
        %v595 = vpack.c.b16 %v580, %v579
        %v596 = vpack.c.b16 %v582, %v581
        %v597 = vpack.c.b16 %v584, %v583
        %v598 = vpack.c.b16 %v586, %v585
        %v599 = vpack.c.b16 %v588, %v587
        %v600 = vpack.c.b16 %v590, %v589
        %v601 = vpack.c.b16 %v592, %v591
        %v602 = vpack.c.b16 %v594, %v593
        %611 = vmatpush.bf16.msra.mxu0 %v602
        %612 = vmatpush.bf16.msra.mxu0 %v601
        %613 = vmatpush.bf16.msra.mxu0 %v600
        %614 = vmatpush.bf16.msra.mxu0 %v599
        %615 = vmatpush.bf16.msra.mxu0 %v598
        %616 = vmatpush.bf16.msra.mxu0 %v597
        %617 = vmatpush.bf16.msra.mxu0 %v596
        %618 = vmatpush.bf16.msra.mxu0 %v595
        %619 = vmatmul.bf16.gmra.mxu0 %v541
        %v620 = vpop.f32.mrf.mxu0
        %v621 = vadd.f32 %v561, %v620
        %v622 = vpop.f32.mrf.mxu0
        %v623 = vadd.f32 %v561, %v622
        %624 = vmatmul.bf16.gmra.mxu0 %v542
        %v625 = vpop.f32.mrf.mxu0
        %v626 = vadd.f32 %v561, %v625
        %v627 = vpop.f32.mrf.mxu0
        %v628 = vadd.f32 %v561, %v627
        %629 = vdwg.mxu0
        %v630 = vtanh.pop %v621
        %v631 = vtanh.pop %v623
        %v632 = vtanh.pop %v626
        %v633 = vtanh.pop %v628
        %634 = vst [vmem:[%s342] sm:$0xff] %v630
        %635 = vst [vmem:[%s342 + $0x8] sm:$0xff] %v631
        %636 = vst [vmem:[%s342 + $0x10] sm:$0xff] %v632
        %637 = vst [vmem:[%s342 + $0x18] sm:$0xff] %v633
        %s638 = sand.u32 %s230, 1
        %s639 = scalar_lea.sflag [#allocation3], %s638
        %s640 = sand.u32 %s230, 1
        %s641 = smul.addr %s640, 32
        %s642 = scalar_lea.vmem [#allocation2], %s641
        // Predicated region
        $region57: #{tpu_custom_call.1} parent=55 // pred_check
          %p643 = pneg %p240
        $region58: #{tpu_custom_call.1} parent=55 // pred_check_branch
          %645 = sbr.rel (%p643) target = $region60
        $region59: #{tpu_custom_call.1} parent=55 // pred_region
          %s646 = smul.u32 4, %s23
          %648 = vsyncadd %s639, 0
          %s649 = smul.addr %s646, 8
          %s650 = scalar_lea.hbm %s9, %s649
          %s651 = sshll.u32 %s642, 4
          %s652 = int_to_ptr.vmem [resolvable:$true] %s651
          %s653 = sshll.u32 %s650, 4
          %s654 = int_to_ptr.hbm [resolvable:$true] %s653
          %659 = dma.vmem_to_hbm [thread:$0]  %s652, 512, %s654, %s639, 128, 128, 8
        $region60: #{tpu_custom_call.1} parent=55 // pred_fallthru
          _
      $region56: #{tpu_custom_call.1} parent=5 // pred_fallthru
        _
      %p660 = scmp.le.s32.totalorder 2, %s18
      // Predicated region
      $region61: #{tpu_custom_call.1} parent=5 // pred_check
        %p661 = pneg %p660
      $region62: #{tpu_custom_call.1} parent=5 // pred_check_branch
        %663 = sbr.rel (%p661) target = $region64
      $region63: #{tpu_custom_call.1} parent=5 // pred_region
        %s664 = ssub.s32 %s18, 2
        // Predicated region
        $region65: #{tpu_custom_call.1} parent=63 // pred_check
          %p665 = pneg %p246
        $region66: #{tpu_custom_call.1} parent=63 // pred_check_branch
          %667 = sbr.rel (%p665) target = $region68
        $region67: #{tpu_custom_call.1} parent=63 // pred_region
          %s668 = sand.u32 %s231, 1
          %s669 = scalar_lea.sflag [#allocation3], %s668
          %s670 = sand.u32 %s231, 1
          %s671 = smul.addr %s670, 32
          %s672 = scalar_lea.vmem [#allocation2], %s671
          %674 = dma.done %s669, 512
        $region68: #{tpu_custom_call.1} parent=63 // pred_fallthru
          _
      $region64: #{tpu_custom_call.1} parent=5 // pred_fallthru
        _
    $region6: #{tpu_custom_call.1} parent=1 // loop_footer
      %s22 = sadd.s32 1, %s18
    $region7: #{tpu_custom_call.1} parent=1 // loop_footer_branch
      %17 = sbr.rel target = $region3
    $region8: #{tpu_custom_call.1} parent=1 // loop_exit
      _
    %675 = vsyncpa [#allocation3], 1
    %s676 = scalar_lea.sflag [#allocation3], 1
    %677 = vsyncpa %s676, 1

// kernel: tpu_custom_call.1
$region0: #{tpu_custom_call.1}
  #allocation0 [shape = 'u32[]', space=smem, size = 0x4, offset = 0x4, fixed_abs, tag = 'smem constant byte address 0x4 - core index']
  #allocation1 [shape = 'u32[72,128]{1,0:T(1,128)}', space=vmem, size = 0x9000, scoped, tag = 'internal scratch']
  %s0 = inlined_call_operand.vmem [shape: f32[64,16], index: 0, kind: input, shape index: {}]
  %s1 = inlined_call_operand.vmem [shape: f32[64,16], index: 1, kind: input, shape index: {}]
  %s2 = inlined_call_operand.vmem [shape: bf16[16,128], index: 2, kind: input, shape index: {}]
  %s3 = inlined_call_operand.vmem [shape: bf16[16,128], index: 3, kind: input, shape index: {}]
  %s4 = inlined_call_operand.vmem [shape: f32[1,128], index: 4, kind: input, shape index: {}]
  %s5 = inlined_call_operand.vmem [shape: bf16[128,128], index: 5, kind: input, shape index: {}]
  %s6 = inlined_call_operand.vmem [shape: f32[1,128], index: 6, kind: input, shape index: {}]
  %s7 = inlined_call_operand.vmem [shape: bf16[128,128], index: 7, kind: input, shape index: {}]
  %s8 = inlined_call_operand.vmem [shape: f32[1,128], index: 8, kind: input, shape index: {}]
  %s9 = inlined_call_operand.hbm [shape: f32[64,128], index: 9, kind: output, shape index: {}]
  %s10 = sld [smem:[#allocation0]]
  $region69: #{tpu_custom_call.1} parent=0
    _
  %s12 = ssub.s32 1, %s10
  %s13 = scalar_select 0, %s12, %s10
  $region1: #{tpu_custom_call.1} parent=0
    #allocation2 [shape = 'u8[32768]{0}', space=vmem, size = 0x8000, scoped, tag = 'output window, operand 0']
    #allocation3 [shape = 's32[2]{0}', space=sflag, size = 0x8, scoped, tag = 'scoped memory for tpu_custom_call.1']
    %14 = vsyncpa [#allocation3], 0
    %s15 = scalar_lea.sflag [#allocation3], 1
    %16 = vsyncpa %s15, 0
    loop: start=0, step=1, limit=4
    $region2: #{tpu_custom_call.1} parent=1 // loop_pre_header
      _
    $region3: #{tpu_custom_call.1} parent=1 // loop_header
      %s18 = sphi 0, %s22
      %p19 = scmp.ge.s32.totalorder %s18, 4
      %s28 = sphi 0, %s30
      %s31 = sphi 0, %s28
      %s32 = sphi 0, %s31
      %s48 = sphi 0, %s32
      %s54 = sphi 0, %s56
      %s57 = sphi 0, %s54
      %s58 = sphi 0, %s57
      %s74 = sphi 0, %s58
      %s78 = sphi 0, %s78
      %s80 = sphi 0, %s78
      %s81 = sphi 0, %s80
      %s95 = sphi 0, %s81
      %s99 = sphi 0, %s99
      %s101 = sphi 0, %s99
      %s102 = sphi 0, %s101
      %s116 = sphi 0, %s102
      %s120 = sphi 0, %s120
      %s122 = sphi 0, %s120
      %s123 = sphi 0, %s122
      %s137 = sphi 0, %s123
      %s141 = sphi 0, %s141
      %s143 = sphi 0, %s141
      %s144 = sphi 0, %s143
      %s158 = sphi 0, %s144
      %s162 = sphi 0, %s162
      %s164 = sphi 0, %s162
      %s165 = sphi 0, %s164
      %s179 = sphi 0, %s165
      %s183 = sphi 0, %s183
      %s185 = sphi 0, %s183
      %s186 = sphi 0, %s185
      %s200 = sphi 0, %s186
      %s204 = sphi 0, %s204
      %s206 = sphi 0, %s204
      %s207 = sphi 0, %s206
      %s221 = sphi 0, %s207
      %s227 = sphi 0, %s229
      %s230 = sphi 0, %s227
      %s231 = sphi 0, %s230
      %s247 = sphi 0, %s231
    $region4: #{tpu_custom_call.1} parent=1 // loop_header_branch
      %21 = sbr.rel (%p19) target = $region8
    $region5: #{tpu_custom_call.1} parent=1 // loop_body
      %s23 = ssub.s32 %s18, 1
      %s24 = ssub.s32 %s18, 2
      %s25 = sadd.s32 %s18, 1
      %s26 = ssub.s32 %s18, %s25
      %p27 = scmp.eq.s32.totalorder %s26, 0
      %s29 = sadd.s32 %s28, 1
      %s30 = scalar_select %p27, %s28, %s29
      %p33 = pneg %p27
      %p34 = scmp.eq.s32.totalorder %s18, 1
      %p35 = por %p33, %p34
      %p36 = scmp.ne.s32.totalorder %s28, %s31
      %p37 = scmp.eq.s32.totalorder %s18, 0
      %p38 = por %p36, %p37
      %p39 = scmp.ne.s32.totalorder %s28, %s31
      %p40 = scmp.eq.s32.totalorder %s23, 1
      %p41 = por %p39, %p40
      %p42 = scmp.ne.s32.totalorder %s31, %s32
      %p43 = scmp.eq.s32.totalorder %s23, 0
      %p44 = por %p42, %p43
      %p45 = scmp.ne.s32.totalorder %s31, %s32
      %p46 = scmp.eq.s32.totalorder %s24, 1
      %p47 = por %p45, %p46
      %p49 = scmp.ne.s32.totalorder %s32, %s48
      %p50 = scmp.eq.s32.totalorder %s24, 0
      %p51 = por %p49, %p50
      %s52 = ssub.s32 %s18, %s25
      %p53 = scmp.eq.s32.totalorder %s52, 0
      %s55 = sadd.s32 %s54, 1
      %s56 = scalar_select %p53, %s54, %s55
      %p59 = pneg %p53
      %p60 = scmp.eq.s32.totalorder %s18, 1
      %p61 = por %p59, %p60
      %p62 = scmp.ne.s32.totalorder %s54, %s57
      %p63 = scmp.eq.s32.totalorder %s18, 0
      %p64 = por %p62, %p63
      %p65 = scmp.ne.s32.totalorder %s54, %s57
      %p66 = scmp.eq.s32.totalorder %s23, 1
      %p67 = por %p65, %p66
      %p68 = scmp.ne.s32.totalorder %s57, %s58
      %p69 = scmp.eq.s32.totalorder %s23, 0
      %p70 = por %p68, %p69
      %p71 = scmp.ne.s32.totalorder %s57, %s58
      %p72 = scmp.eq.s32.totalorder %s24, 1
      %p73 = por %p71, %p72
      %p75 = scmp.ne.s32.totalorder %s58, %s74
      %p76 = scmp.eq.s32.totalorder %s24, 0
      %p77 = por %p75, %p76
      %s79 = sadd.s32 %s78, 1
      %p82 = scmp.eq.s32.totalorder %s18, 1
      %p83 = scmp.ne.s32.totalorder %s78, %s80
      %p84 = scmp.eq.s32.totalorder %s18, 0
      %p85 = por %p83, %p84
      %p86 = scmp.ne.s32.totalorder %s78, %s80
      %p87 = scmp.eq.s32.totalorder %s23, 1
      %p88 = por %p86, %p87
      %p89 = scmp.ne.s32.totalorder %s80, %s81
      %p90 = scmp.eq.s32.totalorder %s23, 0
      %p91 = por %p89, %p90
      %p92 = scmp.ne.s32.totalorder %s80, %s81
      %p93 = scmp.eq.s32.totalorder %s24, 1
      %p94 = por %p92, %p93
      %p96 = scmp.ne.s32.totalorder %s81, %s95
      %p97 = scmp.eq.s32.totalorder %s24, 0
      %p98 = por %p96, %p97
      %s100 = sadd.s32 %s99, 1
      %p103 = scmp.eq.s32.totalorder %s18, 1
      %p104 = scmp.ne.s32.totalorder %s99, %s101
      %p105 = scmp.eq.s32.totalorder %s18, 0
      %p106 = por %p104, %p105
      %p107 = scmp.ne.s32.totalorder %s99, %s101
      %p108 = scmp.eq.s32.totalorder %s23, 1
      %p109 = por %p107, %p108
      %p110 = scmp.ne.s32.totalorder %s101, %s102
      %p111 = scmp.eq.s32.totalorder %s23, 0
      %p112 = por %p110, %p111
      %p113 = scmp.ne.s32.totalorder %s101, %s102
      %p114 = scmp.eq.s32.totalorder %s24, 1
      %p115 = por %p113, %p114
      %p117 = scmp.ne.s32.totalorder %s102, %s116
      %p118 = scmp.eq.s32.totalorder %s24, 0
      %p119 = por %p117, %p118
      %s121 = sadd.s32 %s120, 1
      %p124 = scmp.eq.s32.totalorder %s18, 1
      %p125 = scmp.ne.s32.totalorder %s120, %s122
      %p126 = scmp.eq.s32.totalorder %s18, 0
      %p127 = por %p125, %p126
      %p128 = scmp.ne.s32.totalorder %s120, %s122
      %p129 = scmp.eq.s32.totalorder %s23, 1
      %p130 = por %p128, %p129
      %p131 = scmp.ne.s32.totalorder %s122, %s123
      %p132 = scmp.eq.s32.totalorder %s23, 0
      %p133 = por %p131, %p132
      %p134 = scmp.ne.s32.totalorder %s122, %s123
      %p135 = scmp.eq.s32.totalorder %s24, 1
      %p136 = por %p134, %p135
      %p138 = scmp.ne.s32.totalorder %s123, %s137
      %p139 = scmp.eq.s32.totalorder %s24, 0
      %p140 = por %p138, %p139
      %s142 = sadd.s32 %s141, 1
      %p145 = scmp.eq.s32.totalorder %s18, 1
      %p146 = scmp.ne.s32.totalorder %s141, %s143
      %p147 = scmp.eq.s32.totalorder %s18, 0
      %p148 = por %p146, %p147
      %p149 = scmp.ne.s32.totalorder %s141, %s143
      %p150 = scmp.eq.s32.totalorder %s23, 1
      %p151 = por %p149, %p150
      %p152 = scmp.ne.s32.totalorder %s143, %s144
      %p153 = scmp.eq.s32.totalorder %s23, 0
      %p154 = por %p152, %p153
      %p155 = scmp.ne.s32.totalorder %s143, %s144
      %p156 = scmp.eq.s32.totalorder %s24, 1
      %p157 = por %p155, %p156
      %p159 = scmp.ne.s32.totalorder %s144, %s158
      %p160 = scmp.eq.s32.totalorder %s24, 0
      %p161 = por %p159, %p160
      %s163 = sadd.s32 %s162, 1
      %p166 = scmp.eq.s32.totalorder %s18, 1
      %p167 = scmp.ne.s32.totalorder %s162, %s164
      %p168 = scmp.eq.s32.totalorder %s18, 0
      %p169 = por %p167, %p168
      %p170 = scmp.ne.s32.totalorder %s162, %s164
      %p171 = scmp.eq.s32.totalorder %s23, 1
      %p172 = por %p170, %p171
      %p173 = scmp.ne.s32.totalorder %s164, %s165
      %p174 = scmp.eq.s32.totalorder %s23, 0
      %p175 = por %p173, %p174
      %p176 = scmp.ne.s32.totalorder %s164, %s165
      %p177 = scmp.eq.s32.totalorder %s24, 1
      %p178 = por %p176, %p177
      %p180 = scmp.ne.s32.totalorder %s165, %s179
      %p181 = scmp.eq.s32.totalorder %s24, 0
      %p182 = por %p180, %p181
      %s184 = sadd.s32 %s183, 1
      %p187 = scmp.eq.s32.totalorder %s18, 1
      %p188 = scmp.ne.s32.totalorder %s183, %s185
      %p189 = scmp.eq.s32.totalorder %s18, 0
      %p190 = por %p188, %p189
      %p191 = scmp.ne.s32.totalorder %s183, %s185
      %p192 = scmp.eq.s32.totalorder %s23, 1
      %p193 = por %p191, %p192
      %p194 = scmp.ne.s32.totalorder %s185, %s186
      %p195 = scmp.eq.s32.totalorder %s23, 0
      %p196 = por %p194, %p195
      %p197 = scmp.ne.s32.totalorder %s185, %s186
      %p198 = scmp.eq.s32.totalorder %s24, 1
      %p199 = por %p197, %p198
      %p201 = scmp.ne.s32.totalorder %s186, %s200
      %p202 = scmp.eq.s32.totalorder %s24, 0
      %p203 = por %p201, %p202
      %s205 = sadd.s32 %s204, 1
      %p208 = scmp.eq.s32.totalorder %s18, 1
      %p209 = scmp.ne.s32.totalorder %s204, %s206
      %p210 = scmp.eq.s32.totalorder %s18, 0
      %p211 = por %p209, %p210
      %p212 = scmp.ne.s32.totalorder %s204, %s206
      %p213 = scmp.eq.s32.totalorder %s23, 1
      %p214 = por %p212, %p213
      %p215 = scmp.ne.s32.totalorder %s206, %s207
      %p216 = scmp.eq.s32.totalorder %s23, 0
      %p217 = por %p215, %p216
      %p218 = scmp.ne.s32.totalorder %s206, %s207
      %p219 = scmp.eq.s32.totalorder %s24, 1
      %p220 = por %p218, %p219
      %p222 = scmp.ne.s32.totalorder %s207, %s221
      %p223 = scmp.eq.s32.totalorder %s24, 0
      %p224 = por %p222, %p223
      %s225 = ssub.s32 %s18, %s25
      %p226 = scmp.eq.s32.totalorder %s225, 0
      %s228 = sadd.s32 %s227, 1
      %s229 = scalar_select %p226, %s227, %s228
      %p232 = pneg %p226
      %p233 = scmp.eq.s32.totalorder %s18, 1
      %p234 = por %p232, %p233
      %p235 = scmp.ne.s32.totalorder %s227, %s230
      %p236 = scmp.eq.s32.totalorder %s18, 0
      %p237 = por %p235, %p236
      %p238 = scmp.ne.s32.totalorder %s227, %s230
      %p239 = scmp.eq.s32.totalorder %s23, 1
      %p240 = por %p238, %p239
      %p241 = scmp.ne.s32.totalorder %s230, %s231
      %p242 = scmp.eq.s32.totalorder %s23, 0
      %p243 = por %p241, %p242
      %p244 = scmp.ne.s32.totalorder %s230, %s231
      %p245 = scmp.eq.s32.totalorder %s24, 1
      %p246 = por %p244, %p245
      %p248 = scmp.ne.s32.totalorder %s231, %s247
      %p249 = scmp.eq.s32.totalorder %s24, 0
      %p250 = por %p248, %p249
      %p251 = scmp.le.s32.totalorder 1, %s18
      %p252 = scmp.lt.s32.totalorder %s18, 3
      %p253 = pnand %p251, %p252
      %p254 = pneg %p253
      // Predicated region
      $region9: #{tpu_custom_call.1} parent=5 // pred_check
        _
      $region10: #{tpu_custom_call.1} parent=5 // pred_check_branch
        %256 = sbr.rel (%p253) target = $region12
      $region11: #{tpu_custom_call.1} parent=5 // pred_region
        %s257 = ssub.s32 %s18, 1
        // Predicated region
        $region13: #{tpu_custom_call.1} parent=11 // pred_check
          %p258 = pneg %p91
        $region14: #{tpu_custom_call.1} parent=11 // pred_check_branch
          %260 = sbr.rel (%p258) target = $region16
        $region15: #{tpu_custom_call.1} parent=11 // pred_region
          _
        $region16: #{tpu_custom_call.1} parent=11 // pred_fallthru
          _
        // Predicated region
        $region17: #{tpu_custom_call.1} parent=11 // pred_check
          %p261 = pneg %p112
        $region18: #{tpu_custom_call.1} parent=11 // pred_check_branch
          %263 = sbr.rel (%p261) target = $region20
        $region19: #{tpu_custom_call.1} parent=11 // pred_region
          _
        $region20: #{tpu_custom_call.1} parent=11 // pred_fallthru
          _
        // Predicated region
        $region21: #{tpu_custom_call.1} parent=11 // pred_check
          %p264 = pneg %p133
        $region22: #{tpu_custom_call.1} parent=11 // pred_check_branch
          %266 = sbr.rel (%p264) target = $region24
        $region23: #{tpu_custom_call.1} parent=11 // pred_region
          _
        $region24: #{tpu_custom_call.1} parent=11 // pred_fallthru
          _
        // Predicated region
        $region25: #{tpu_custom_call.1} parent=11 // pred_check
          %p267 = pneg %p154
        $region26: #{tpu_custom_call.1} parent=11 // pred_check_branch
          %269 = sbr.rel (%p267) target = $region28
        $region27: #{tpu_custom_call.1} parent=11 // pred_region
          _
        $region28: #{tpu_custom_call.1} parent=11 // pred_fallthru
          _
        // Predicated region
        $region29: #{tpu_custom_call.1} parent=11 // pred_check
          %p270 = pneg %p175
        $region30: #{tpu_custom_call.1} parent=11 // pred_check_branch
          %272 = sbr.rel (%p270) target = $region32
        $region31: #{tpu_custom_call.1} parent=11 // pred_region
          _
        $region32: #{tpu_custom_call.1} parent=11 // pred_fallthru
          _
        // Predicated region
        $region33: #{tpu_custom_call.1} parent=11 // pred_check
          %p273 = pneg %p196
        $region34: #{tpu_custom_call.1} parent=11 // pred_check_branch
          %275 = sbr.rel (%p273) target = $region36
        $region35: #{tpu_custom_call.1} parent=11 // pred_region
          _
        $region36: #{tpu_custom_call.1} parent=11 // pred_fallthru
          _
        // Predicated region
        $region37: #{tpu_custom_call.1} parent=11 // pred_check
          %p276 = pneg %p217
        $region38: #{tpu_custom_call.1} parent=11 // pred_check_branch
          %278 = sbr.rel (%p276) target = $region40
        $region39: #{tpu_custom_call.1} parent=11 // pred_region
          _
        $region40: #{tpu_custom_call.1} parent=11 // pred_fallthru
          _
      $region12: #{tpu_custom_call.1} parent=5 // pred_fallthru
        _
      %p279 = scmp.lt.s32.totalorder %s18, 2
      // Predicated region
      $region41: #{tpu_custom_call.1} parent=5 // pred_check
        %p280 = pneg %p279
      $region42: #{tpu_custom_call.1} parent=5 // pred_check_branch
        %282 = sbr.rel (%p280) target = $region44
      $region43: #{tpu_custom_call.1} parent=5 // pred_region
        // Predicated region
        $region45: #{tpu_custom_call.1} parent=43 // pred_check
          %p283 = pneg %p38
        $region46: #{tpu_custom_call.1} parent=43 // pred_check_branch
          %285 = sbr.rel (%p283) target = $region48
        $region47: #{tpu_custom_call.1} parent=43 // pred_region
          %s286 = smul.u32 4, %s18
          %p287 = scmp.lt.s32.totalorder %s286, 7
          %s288 = scalar_select %p287, %s286, 7
          %s289 = smul.addr %s288, 8
          %s290 = scalar_lea.vmem %s0, %s289
          %s291 = smul.u32 4, %s18
        $region48: #{tpu_custom_call.1} parent=43 // pred_fallthru
          _
        // Predicated region
        $region49: #{tpu_custom_call.1} parent=43 // pred_check
          %p292 = pneg %p64
        $region50: #{tpu_custom_call.1} parent=43 // pred_check_branch
          %294 = sbr.rel (%p292) target = $region52
        $region51: #{tpu_custom_call.1} parent=43 // pred_region
          %s295 = smul.u32 4, %s18
          %p296 = scmp.lt.s32.totalorder %s295, 7
          %s297 = scalar_select %p296, %s295, 7
          %s298 = smul.addr %s297, 8
          %s299 = scalar_lea.vmem %s1, %s298
          %s300 = smul.u32 4, %s18
        $region52: #{tpu_custom_call.1} parent=43 // pred_fallthru
          _
      $region44: #{tpu_custom_call.1} parent=5 // pred_fallthru
        _
      %p301 = scmp.le.s32.totalorder 1, %s18
      %p302 = scmp.lt.s32.totalorder %s18, 3
      %p303 = pnand %p301, %p302
      %p304 = pneg %p303
      // Predicated region
      $region53: #{tpu_custom_call.1} parent=5 // pred_check
        _
      $region54: #{tpu_custom_call.1} parent=5 // pred_check_branch
        %306 = sbr.rel (%p303) target = $region56
      $region55: #{tpu_custom_call.1} parent=5 // pred_region
        %s307 = ssub.s32 %s18, 1
        %s308 = smul.u32 4, %s23
        %p309 = scmp.lt.s32.totalorder %s308, 7
        %s310 = scalar_select %p309, %s308, 7
        %s311 = smul.addr %s310, 8
        %s312 = scalar_lea.vmem %s0, %s311
        %p313 = pneg %p44
        %p314 = pneg %p41
        %s315 = smul.u32 4, %s23
        %p316 = scmp.lt.s32.totalorder %s315, 7
        %s317 = scalar_select %p316, %s315, 7
        %s318 = smul.addr %s317, 8
        %s319 = scalar_lea.vmem %s1, %s318
        %p320 = pneg %p70
        %p321 = pneg %p67
        %p322 = pneg %p91
        %p323 = pneg %p88
        %p324 = pneg %p112
        %p325 = pneg %p109
        %p326 = pneg %p133
        %p327 = pneg %p130
        %p328 = pneg %p154
        %p329 = pneg %p151
        %p330 = pneg %p175
        %p331 = pneg %p172
        %p332 = pneg %p196
        %p333 = pneg %p193
        %p334 = pneg %p217
        %p335 = pneg %p214
        %p336 = pneg %p243
        %p337 = pneg %p240
        %s338 = sand.u32 %s230, 1
        %s339 = scalar_lea.sflag [#allocation3], %s338
        %s340 = sand.u32 %s230, 1
        %s341 = smul.addr %s340, 32
        %s342 = scalar_lea.vmem [#allocation2], %s341
        %s343 = smul.u32 4, %s23
        %p344 = scmp.lt.s32.totalorder %s343, 7
        %s345 = scalar_select %p344, %s343, 7
        %s346 = smul.addr %s345, 8
        %s347 = scalar_lea.vmem %s0, %s346
        %s348 = smul.u32 4, %s23
        %s349 = smul.u32 4, %s23
        %p350 = scmp.lt.s32.totalorder %s349, 7
        %s351 = scalar_select %p350, %s349, 7
        %s352 = smul.addr %s351, 8
        %s353 = scalar_lea.vmem %s1, %s352
        %s354 = smul.u32 4, %s23
        %s355 = smul.u32 4, %s23
        %v357 = vld [vmem:[%s347] sm:$0xff]
        %v358 = vld [vmem:[%s347 + $0x8] sm:$0xff]
        %v359 = vld [vmem:[%s347 + $0x10] sm:$0xff]
        %v360 = vld [vmem:[%s347 + $0x18] sm:$0xff]
        %v361 = vpack.c.bf16 %v358, %v357
        %v362 = vpack.c.bf16 %v360, %v359
        %v363 = vld [vmem:[%s2] sm:$0xf]
        %v364 = vld [vmem:[%s2 + $0x4] sm:$0xf]
        %v365 = vld [vmem:[%s353] sm:$0xff]
        %v366 = vld [vmem:[%s353 + $0x8] sm:$0xff]
        %v367 = vld [vmem:[%s353 + $0x10] sm:$0xff]
        %v368 = vld [vmem:[%s353 + $0x18] sm:$0xff]
        %v369 = vpack.c.bf16 %v366, %v365
        %v370 = vpack.c.bf16 %v368, %v367
        %v371 = vld [vmem:[%s3] sm:$0xf]
        %v372 = vld [vmem:[%s3 + $0x4] sm:$0xf]
        %v375 = vunpack.c.l.b16 %v371
        %v376 = vunpack.c.l.b16 %v372
        %v377 = vpack.c.b16 %v376, %v375
        %vm379 = vcmask 130048
        %v381 = vsel %vm379, %v369, 0
        %v384 = vsel %vm379, %v370, 0
        %386 = vmatpush.bf16.msra.mxu0 0
        %387 = vmatpush.bf16.msra.mxu0 0
        %388 = vmatpush.bf16.msra.mxu0 0
        %389 = vmatpush.bf16.msra.mxu0 0
        %390 = vmatpush.bf16.msra.mxu0 0
        %391 = vmatpush.bf16.msra.mxu0 0
        %392 = vmatpush.bf16.msra.mxu0 0
        %393 = vmatpush.bf16.msra.mxu0 %v377
        %394 = vmatmul.bf16.gmra.mxu0 %v381
        %v395 = vpop.f32.mrf.mxu0
        %v396 = vadd.f32 0.0, %v395
        %v397 = vpop.f32.mrf.mxu0
        %v398 = vadd.f32 0.0, %v397
        %399 = vmatmul.bf16.gmra.mxu0 %v384
        %v400 = vpop.f32.mrf.mxu0
        %v401 = vadd.f32 0.0, %v400
        %v402 = vpop.f32.mrf.mxu0
        %v403 = vadd.f32 0.0, %v402
        %404 = vdwg.mxu0
        %v407 = vunpack.c.l.b16 %v363
        %v408 = vunpack.c.l.b16 %v364
        %v409 = vpack.c.b16 %v408, %v407
        %v412 = vsel %vm379, %v361, 0
        %v415 = vsel %vm379, %v362, 0
        %417 = vmatpush.bf16.msra.mxu0 0
        %418 = vmatpush.bf16.msra.mxu0 0
        %419 = vmatpush.bf16.msra.mxu0 0
        %420 = vmatpush.bf16.msra.mxu0 0
        %421 = vmatpush.bf16.msra.mxu0 0
        %422 = vmatpush.bf16.msra.mxu0 0
        %423 = vmatpush.bf16.msra.mxu0 0
        %424 = vmatpush.bf16.msra.mxu0 %v409
        %425 = vmatmul.bf16.gmra.mxu0 %v412
        %v426 = vpop.f32.mrf.mxu0
        %v427 = vadd.f32 %v396, %v426
        %v428 = vpop.f32.mrf.mxu0
        %v429 = vadd.f32 %v398, %v428
        %430 = vmatmul.bf16.gmra.mxu0 %v415
        %v431 = vpop.f32.mrf.mxu0
        %v432 = vadd.f32 %v401, %v431
        %v433 = vpop.f32.mrf.mxu0
        %v434 = vadd.f32 %v403, %v433
        %435 = vdwg.mxu0
        %v436 = vld [vmem:[%s4] sm:$0x1]
        %v438 = vperm.slane %v436, 0
        %v440 = vadd.f32 %v427, %v438
        %v441 = vadd.f32 %v429, %v438
        %v442 = vadd.f32 %v432, %v438
        %v443 = vadd.f32 %v434, %v438
        %v444 = vmax.f32 %v440, 0.0
        %v445 = vmax.f32 %v441, 0.0
        %v446 = vmax.f32 %v442, 0.0
        %v447 = vmax.f32 %v443, 0.0
        %v448 = vpack.c.bf16 %v445, %v444
        %v449 = vpack.c.bf16 %v447, %v446
        %v450 = vld [vmem:[%s5] sm:$0xf]
        %v451 = vld [vmem:[%s5 + $0x4] sm:$0xf]
        %v452 = vld [vmem:[%s5 + $0x8] sm:$0xf]
        %v453 = vld [vmem:[%s5 + $0xc] sm:$0xf]
        %v454 = vld [vmem:[%s5 + $0x10] sm:$0xf]
        %v455 = vld [vmem:[%s5 + $0x14] sm:$0xf]
        %v456 = vld [vmem:[%s5 + $0x18] sm:$0xf]
        %v457 = vld [vmem:[%s5 + $0x1c] sm:$0xf]
        %v458 = vld [vmem:[%s5 + $0x20] sm:$0xf]
        %v459 = vld [vmem:[%s5 + $0x24] sm:$0xf]
        %v460 = vld [vmem:[%s5 + $0x28] sm:$0xf]
        %v461 = vld [vmem:[%s5 + $0x2c] sm:$0xf]
        %v462 = vld [vmem:[%s5 + $0x30] sm:$0xf]
        %v463 = vld [vmem:[%s5 + $0x34] sm:$0xf]
        %v464 = vld [vmem:[%s5 + $0x38] sm:$0xf]
        %v465 = vld [vmem:[%s5 + $0x3c] sm:$0xf]
        %v466 = vld [vmem:[%s6] sm:$0x1]
        %v468 = vperm.slane %v466, 0
        %v486 = vunpack.c.l.b16 %v450
        %v487 = vunpack.c.l.b16 %v451
        %v488 = vunpack.c.l.b16 %v452
        %v489 = vunpack.c.l.b16 %v453
        %v490 = vunpack.c.l.b16 %v454
        %v491 = vunpack.c.l.b16 %v455
        %v492 = vunpack.c.l.b16 %v456
        %v493 = vunpack.c.l.b16 %v457
        %v494 = vunpack.c.l.b16 %v458
        %v495 = vunpack.c.l.b16 %v459
        %v496 = vunpack.c.l.b16 %v460
        %v497 = vunpack.c.l.b16 %v461
        %v498 = vunpack.c.l.b16 %v462
        %v499 = vunpack.c.l.b16 %v463
        %v500 = vunpack.c.l.b16 %v464
        %v501 = vunpack.c.l.b16 %v465
        %v502 = vpack.c.b16 %v487, %v486
        %v503 = vpack.c.b16 %v489, %v488
        %v504 = vpack.c.b16 %v491, %v490
        %v505 = vpack.c.b16 %v493, %v492
        %v506 = vpack.c.b16 %v495, %v494
        %v507 = vpack.c.b16 %v497, %v496
        %v508 = vpack.c.b16 %v499, %v498
        %v509 = vpack.c.b16 %v501, %v500
        %518 = vmatpush.bf16.msra.mxu0 %v509
        %519 = vmatpush.bf16.msra.mxu0 %v508
        %520 = vmatpush.bf16.msra.mxu0 %v507
        %521 = vmatpush.bf16.msra.mxu0 %v506
        %522 = vmatpush.bf16.msra.mxu0 %v505
        %523 = vmatpush.bf16.msra.mxu0 %v504
        %524 = vmatpush.bf16.msra.mxu0 %v503
        %525 = vmatpush.bf16.msra.mxu0 %v502
        %526 = vmatmul.bf16.gmra.mxu0 %v448
        %v527 = vpop.f32.mrf.mxu0
        %v528 = vadd.f32 %v468, %v527
        %v529 = vpop.f32.mrf.mxu0
        %v530 = vadd.f32 %v468, %v529
        %531 = vmatmul.bf16.gmra.mxu0 %v449
        %v532 = vpop.f32.mrf.mxu0
        %v533 = vadd.f32 %v468, %v532
        %v534 = vpop.f32.mrf.mxu0
        %v535 = vadd.f32 %v468, %v534
        %536 = vdwg.mxu0
        %v537 = vmax.f32 %v528, 0.0
        %v538 = vmax.f32 %v530, 0.0
        %v539 = vmax.f32 %v533, 0.0
        %v540 = vmax.f32 %v535, 0.0
        %v541 = vpack.c.bf16 %v538, %v537
        %v542 = vpack.c.bf16 %v540, %v539
        %v543 = vld [vmem:[%s7] sm:$0xf]
        %v544 = vld [vmem:[%s7 + $0x4] sm:$0xf]
        %v545 = vld [vmem:[%s7 + $0x8] sm:$0xf]
        %v546 = vld [vmem:[%s7 + $0xc] sm:$0xf]
        %v547 = vld [vmem:[%s7 + $0x10] sm:$0xf]
        %v548 = vld [vmem:[%s7 + $0x14] sm:$0xf]
        %v549 = vld [vmem:[%s7 + $0x18] sm:$0xf]
        %v550 = vld [vmem:[%s7 + $0x1c] sm:$0xf]
        %v551 = vld [vmem:[%s7 + $0x20] sm:$0xf]
        %v552 = vld [vmem:[%s7 + $0x24] sm:$0xf]
        %v553 = vld [vmem:[%s7 + $0x28] sm:$0xf]
        %v554 = vld [vmem:[%s7 + $0x2c] sm:$0xf]
        %v555 = vld [vmem:[%s7 + $0x30] sm:$0xf]
        %v556 = vld [vmem:[%s7 + $0x34] sm:$0xf]
        %v557 = vld [vmem:[%s7 + $0x38] sm:$0xf]
        %v558 = vld [vmem:[%s7 + $0x3c] sm:$0xf]
        %v559 = vld [vmem:[%s8] sm:$0x1]
        %v561 = vperm.slane %v559, 0
        %v579 = vunpack.c.l.b16 %v543
        %v580 = vunpack.c.l.b16 %v544
        %v581 = vunpack.c.l.b16 %v545
        %v582 = vunpack.c.l.b16 %v546
        %v583 = vunpack.c.l.b16 %v547
        %v584 = vunpack.c.l.b16 %v548
        %v585 = vunpack.c.l.b16 %v549
        %v586 = vunpack.c.l.b16 %v550
        %v587 = vunpack.c.l.b16 %v551
        %v588 = vunpack.c.l.b16 %v552
        %v589 = vunpack.c.l.b16 %v553
        %v590 = vunpack.c.l.b16 %v554
        %v591 = vunpack.c.l.b16 %v555
        %v592 = vunpack.c.l.b16 %v556
        %v593 = vunpack.c.l.b16 %v557
        %v594 = vunpack.c.l.b16 %v558
        %v595 = vpack.c.b16 %v580, %v579
        %v596 = vpack.c.b16 %v582, %v581
        %v597 = vpack.c.b16 %v584, %v583
        %v598 = vpack.c.b16 %v586, %v585
        %v599 = vpack.c.b16 %v588, %v587
        %v600 = vpack.c.b16 %v590, %v589
        %v601 = vpack.c.b16 %v592, %v591
        %v602 = vpack.c.b16 %v594, %v593
        %611 = vmatpush.bf16.msra.mxu0 %v602
        %612 = vmatpush.bf16.msra.mxu0 %v601
        %613 = vmatpush.bf16.msra.mxu0 %v600
        %614 = vmatpush.bf16.msra.mxu0 %v599
        %615 = vmatpush.bf16.msra.mxu0 %v598
        %616 = vmatpush.bf16.msra.mxu0 %v597
        %617 = vmatpush.bf16.msra.mxu0 %v596
        %618 = vmatpush.bf16.msra.mxu0 %v595
        %619 = vmatmul.bf16.gmra.mxu0 %v541
        %v620 = vpop.f32.mrf.mxu0
        %v621 = vadd.f32 %v561, %v620
        %v622 = vpop.f32.mrf.mxu0
        %v623 = vadd.f32 %v561, %v622
        %624 = vmatmul.bf16.gmra.mxu0 %v542
        %v625 = vpop.f32.mrf.mxu0
        %v626 = vadd.f32 %v561, %v625
        %v627 = vpop.f32.mrf.mxu0
        %v628 = vadd.f32 %v561, %v627
        %629 = vdwg.mxu0
        %v630 = vtanh.pop %v621
        %v631 = vtanh.pop %v623
        %v632 = vtanh.pop %v626
        %v633 = vtanh.pop %v628
        %634 = vst [vmem:[%s342] sm:$0xff] %v630
        %635 = vst [vmem:[%s342 + $0x8] sm:$0xff] %v631
        %636 = vst [vmem:[%s342 + $0x10] sm:$0xff] %v632
        %637 = vst [vmem:[%s342 + $0x18] sm:$0xff] %v633
        %s638 = sand.u32 %s230, 1
        %s639 = scalar_lea.sflag [#allocation3], %s638
        %s640 = sand.u32 %s230, 1
        %s641 = smul.addr %s640, 32
        %s642 = scalar_lea.vmem [#allocation2], %s641
        // Predicated region
        $region57: #{tpu_custom_call.1} parent=55 // pred_check
          %p643 = pneg %p240
        $region58: #{tpu_custom_call.1} parent=55 // pred_check_branch
          %645 = sbr.rel (%p643) target = $region60
        $region59: #{tpu_custom_call.1} parent=55 // pred_region
          %s646 = smul.u32 4, %s23
          %648 = vsyncadd %s639, 0
          %s649 = smul.addr %s646, 8
          %s650 = scalar_lea.hbm %s9, %s649
          %s651 = sshll.u32 %s642, 4
          %s652 = int_to_ptr.vmem [resolvable:$true] %s651
          %s653 = sshll.u32 %s650, 4
          %s654 = int_to_ptr.hbm [resolvable:$true] %s653
          %659 = dma.vmem_to_hbm [thread:$0]  %s652, 512, %s654, %s639, 128, 128, 8
        $region60: #{tpu_custom_call.1} parent=55 // pred_fallthru
          _
      $region56: #{tpu_custom_call.1} parent=5 // pred_fallthru
        _
      %p660 = scmp.le.s32.totalorder 2, %s18
      // Predicated region
      $region61: #{tpu_custom_call.1} parent=5 // pred_check
        %p661 = pneg %p660
      $region62: #{tpu_custom_call.1} parent=5 // pred_check_branch
        %663 = sbr.rel (%p661) target = $region64
      $region63: #{tpu_custom_call.1} parent=5 // pred_region
        %s664 = ssub.s32 %s18, 2
        // Predicated region
        $region65: #{tpu_custom_call.1} parent=63 // pred_check
          %p665 = pneg %p246
        $region66: #{tpu_custom_call.1} parent=63 // pred_check_branch
          %667 = sbr.rel (%p665) target = $region68
        $region67: #{tpu_custom_call.1} parent=63 // pred_region
          %s668 = sand.u32 %s231, 1
          %s669 = scalar_lea.sflag [#allocation3], %s668
          %s670 = sand.u32 %s231, 1
          %s671 = smul.addr %s670, 32
          %s672 = scalar_lea.vmem [#allocation2], %s671
          %674 = dma.done %s669, 512
        $region68: #{tpu_custom_call.1} parent=63 // pred_fallthru
          _
      $region64: #{tpu_custom_call.1} parent=5 // pred_fallthru
        _
    $region6: #{tpu_custom_call.1} parent=1 // loop_footer
      %s22 = sadd.s32 1, %s18
    $region7: #{tpu_custom_call.1} parent=1 // loop_footer_branch
      %17 = sbr.rel target = $region3
    $region8: #{tpu_custom_call.1} parent=1 // loop_exit
      _
    %675 = vsyncpa [#allocation3], 1
    %s676 = scalar_lea.sflag [#allocation3], 1
    %677 = vsyncpa %s676, 1

</llo_original>
